<compile_context>
chip_gen: v7x
topology: tpu7x:2x2x1
jax: 0.10.0
libtpu: 0.0.40
codegen_flags: <defaults>
</compile_context>

<pallas_src>
import functools
import math

import jax
import jax.numpy as jnp
from jax.experimental import pallas as pl
from jax.experimental.pallas import tpu as pltpu

LN_EPS = 1e-5
MLP_RATIO = 4
NEG_INF = -1e30  # finite stand-in for float('-inf'); exp() underflows to 0 identically


# ------------------------------ shared math helpers ------------------------------

def _layernorm(x, g, b):
    mu = jnp.mean(x, axis=-1, keepdims=True)
    xc = x - mu
    var = jnp.mean(xc * xc, axis=-1, keepdims=True)
    return xc * jax.lax.rsqrt(var + LN_EPS) * g + b


def _gelu_tanh(x):
    c = 0.7978845608028654  # sqrt(2/pi)
    return 0.5 * x * (1.0 + jnp.tanh(c * (x + 0.044715 * x * x * x)))


# ------------------------------ fused Pallas kernel ------------------------------

def fused_model_kernel(ref_ref, tgt_ref, wproj_ref, bproj_ref, pos_ref, mask_ref,
                       ln1g_ref, ln1b_ref, wqkv_ref, bqkv_ref, wo_ref, bo_ref,
                       ln2g_ref, ln2b_ref, w1_ref, b1_ref, w2_ref, b2_ref,
                       wfin_ref, bfin_ref, out_ref, x_sc, *, num_heads, L):
    """Embed (layer==0) + one transformer block per grid step + final proj (layer==last).

    x lives in the VMEM scratch `x_sc` for the whole layer loop of each batch element.
    """
    layer = pl.program_id(1)
    num_layers = pl.num_programs(1)

    # ----- token embedding: ref_pose_proj + [delta_query | ref_feat | target_feat] + pos -----
    @pl.when(layer == 0)
    def _embed():
        W = wproj_ref[...]                                                           # (9, H)
        b = bproj_ref[...]                                                           # (1, H)
        ref_feat = jnp.dot(ref_ref[0], W, preferred_element_type=jnp.float32) + b    # (L, H)
        tgt_feat = jnp.dot(tgt_ref[0], W, preferred_element_type=jnp.float32) + b    # (1, H)
        # direct slice stores into scratch (no concatenate)
        x_sc[0:L, :] = pos_ref[0:L, :]                      # delta_query = zeros (+ pos)
        x_sc[L:2 * L, :] = ref_feat + pos_ref[L:2 * L, :]
        x_sc[2 * L:2 * L + 1, :] = tgt_feat + pos_ref[2 * L:2 * L + 1, :]

    x = x_sc[...]                       # (T, H)
    T, H = x.shape
    hd = H // num_heads
    scale = 1.0 / math.sqrt(hd)
    mask = mask_ref[...]                # (T, T) additive mask

    # ----- multi-head self-attention (pre-LN), fused QKV + single out-projection -----
    xn = _layernorm(x, ln1g_ref[0], ln1b_ref[0])
    qkv = jnp.dot(xn, wqkv_ref[0], preferred_element_type=jnp.float32) + bqkv_ref[0]  # (T, 3H)

    # per-head scores stacked along sublanes -> one softmax for all heads
    s_rows = []
    for h in range(num_heads):          # tiny static unroll
        qh = qkv[:, h * hd:(h + 1) * hd]                    # (T, hd)
        kh = qkv[:, H + h * hd:H + (h + 1) * hd]            # (T, hd)
        s_rows.append(jnp.dot(qh, kh.T, preferred_element_type=jnp.float32) * scale + mask)
    s = jnp.concatenate(s_rows, axis=0)                     # (nh*T, T)
    s = s - jnp.max(s, axis=-1, keepdims=True)
    p = jnp.exp(s)
    p = p / jnp.sum(p, axis=-1, keepdims=True)

    o_cols = []
    for h in range(num_heads):
        vh = qkv[:, 2 * H + h * hd:2 * H + (h + 1) * hd]    # (T, hd)
        o_cols.append(jnp.dot(p[h * T:(h + 1) * T, :], vh,
                              preferred_element_type=jnp.float32))
    o = jnp.concatenate(o_cols, axis=1)                     # (T, H)
    attn = jnp.dot(o, wo_ref[0], preferred_element_type=jnp.float32) + bo_ref[0]
    x = x + attn

    # ----- MLP (pre-LN) -----
    xn2 = _layernorm(x, ln2g_ref[0], ln2b_ref[0])
    h1 = _gelu_tanh(jnp.dot(xn2, w1_ref[0], preferred_element_type=jnp.float32) + b1_ref[0])
    x = x + jnp.dot(h1, w2_ref[0], preferred_element_type=jnp.float32) + b2_ref[0]
    x_sc[...] = x

    # ----- final linear projection, only on the last layer step -----
    @pl.when(layer == num_layers - 1)
    def _final():
        out_ref[0] = (jnp.dot(x, wfin_ref[...], preferred_element_type=jnp.float32)
                      + bfin_ref[...])


# ------------------------------ wrapper ------------------------------

def singlestep_pose_forward(params, ref_link_poses, target_pose, mask, *, num_heads):
    B, L, _ = ref_link_poses.shape
    H = params['w_proj'].shape[1]
    T = params['pos_enc'].shape[0]
    NL = params['w_qkv'].shape[0]
    tgt = target_pose.reshape(B, 1, 9)

    def per_batch(shape):
        nd = len(shape)
        return pl.BlockSpec((1,) + tuple(shape[1:]),
                            lambda b, l, _nd=nd: (b,) + (0,) * (_nd - 1))

    def const(shape):
        nd = len(shape)
        return pl.BlockSpec(tuple(shape), lambda b, l, _nd=nd: (0,) * _nd)

    def per_layer(shape):
        nd = len(shape)
        return pl.BlockSpec((1,) + tuple(shape[1:]),
                            lambda b, l, _nd=nd: (l,) + (0,) * (_nd - 1))

    kernel = functools.partial(fused_model_kernel, num_heads=num_heads, L=L)

    out = pl.pallas_call(
        kernel,
        out_shape=jax.ShapeDtypeStruct((B, T, 9), jnp.float32),
        grid=(B, NL),
        in_specs=[
            per_batch((B, L, 9)),                   # ref_link_poses
            per_batch((B, 1, 9)),                   # target_pose
            const((9, H)), const((1, H)),           # ref_pose_proj
            const((T, H)),                          # sinusoidal pos-enc
            const((T, T)),                          # additive attention mask
            per_layer(params['ln1_g'].shape), per_layer(params['ln1_b'].shape),
            per_layer(params['w_qkv'].shape), per_layer(params['b_qkv'].shape),
            per_layer(params['w_o'].shape), per_layer(params['b_o'].shape),
            per_layer(params['ln2_g'].shape), per_layer(params['ln2_b'].shape),
            per_layer(params['w1'].shape), per_layer(params['b1'].shape),
            per_layer(params['w2'].shape), per_layer(params['b2'].shape),
            const((H, 9)), const((1, 9)),           # final layer
        ],
        out_specs=per_batch((B, T, 9)),             # same block over layer axis -> resident
        scratch_shapes=[pltpu.VMEM((T, H), jnp.float32)],
        compiler_params=pltpu.CompilerParams(
            dimension_semantics=("parallel", "arbitrary")),
    )(ref_link_poses, tgt, params['w_proj'], params['b_proj'],
      params['pos_enc'], mask,
      params['ln1_g'], params['ln1_b'], params['w_qkv'], params['b_qkv'],
      params['w_o'], params['b_o'], params['ln2_g'], params['ln2_b'],
      params['w1'], params['b1'], params['w2'], params['b2'],
      params['w_final'], params['b_final'])
    return out


# ------------------------------ pure-JAX reference (for the smoke test) ------------------------------

def reference_forward(params, ref_link_poses, target_pose, mask, *, num_heads):
    hp = jax.lax.Precision.HIGHEST
    B, L, _ = ref_link_poses.shape
    H = params['w_proj'].shape[1]
    hd = H // num_heads
    scale = 1.0 / math.sqrt(hd)

    ref_feat = jnp.einsum('bld,dh->blh', ref_link_poses, params['w_proj'],
                          precision=hp) + params['b_proj']
    tgt_feat = jnp.einsum('bd,dh->bh', target_pose, params['w_proj'],
                          precision=hp)[:, None, :] + params['b_proj']
    delta = jnp.zeros_like(ref_feat)
    x = jnp.concatenate([delta, ref_feat, tgt_feat], axis=1) + params['pos_enc'][None]
    T = x.shape[1]

    for l in range(params['w_qkv'].shape[0]):
        xn = _layernorm(x, params['ln1_g'][l], params['ln1_b'][l])
        qkv = jnp.einsum('bth,hk->btk', xn, params['w_qkv'][l], precision=hp) + params['b_qkv'][l]
        q, k, v = qkv[..., :H], qkv[..., H:2 * H], qkv[..., 2 * H:]
        qh = q.reshape(B, T, num_heads, hd).transpose(0, 2, 1, 3)
        kh = k.reshape(B, T, num_heads, hd).transpose(0, 2, 1, 3)
        vh = v.reshape(B, T, num_heads, hd).transpose(0, 2, 1, 3)
        s = jnp.einsum('bhqd,bhkd->bhqk', qh, kh, precision=hp) * scale + mask[None, None]
        p = jax.nn.softmax(s, axis=-1)
        oh = jnp.einsum('bhqk,bhkd->bhqd', p, vh, precision=hp)
        o = oh.transpose(0, 2, 1, 3).reshape(B, T, H)
        attn = jnp.einsum('bth,hk->btk', o, params['w_o'][l], precision=hp) + params['b_o'][l]
        x = x + attn
        xn2 = _layernorm(x, params['ln2_g'][l], params['ln2_b'][l])
        h1 = _gelu_tanh(jnp.einsum('bth,hk->btk', xn2, params['w1'][l], precision=hp)
                        + params['b1'][l])
        x = x + jnp.einsum('bth,hk->btk', h1, params['w2'][l], precision=hp) + params['b2'][l]
    return jnp.einsum('bth,hk->btk', x, params['w_final'], precision=hp) + params['b_final']


# ------------------------------ parameter init (deterministic, synthetic) ------------------------------

def xavier_uniform(key, fan_in, fan_out):
    bound = math.sqrt(6.0 / (fan_in + fan_out))
    return jax.random.uniform(key, (fan_in, fan_out), jnp.float32, -bound, bound)


def sinusoidal_pos_enc(T, D):
    pos = jnp.arange(T, dtype=jnp.float32)[:, None]
    idx = jnp.arange(0, D, 2, dtype=jnp.float32)[None, :]
    ang = pos / jnp.power(10000.0, idx / D)
    pe = jnp.zeros((T, D), jnp.float32)
    pe = pe.at[:, 0::2].set(jnp.sin(ang))
    pe = pe.at[:, 1::2].set(jnp.cos(ang))
    return pe


def init_params(key, hidden_dim, num_heads, num_layers, max_dof):
    H = hidden_dim
    T = (max_dof + 1) * 2 + 1
    keys = jax.random.split(key, 2 + num_layers)
    params = {
        'w_proj': xavier_uniform(keys[0], 9, H),
        'b_proj': jnp.zeros((1, H), jnp.float32),
        'pos_enc': sinusoidal_pos_enc(T, H),
        # final_layer: constant-0 weight & bias, exactly as initialize_weights() specifies
        'w_final': jnp.zeros((H, 9), jnp.float32),
        'b_final': jnp.zeros((1, 9), jnp.float32),
    }
    layers = []
    for l in range(num_layers):
        k = jax.random.split(keys[2 + l], 6)
        wq = xavier_uniform(k[0], H, H)
        wk = xavier_uniform(k[1], H, H)
        wv = xavier_uniform(k[2], H, H)
        layers.append({
            'ln1_g': jnp.ones((1, H), jnp.float32), 'ln1_b': jnp.zeros((1, H), jnp.float32),
            'w_qkv': jnp.concatenate([wq, wk, wv], axis=1),          # (H, 3H) fused QKV
            'b_qkv': jnp.zeros((1, 3 * H), jnp.float32),
            'w_o': xavier_uniform(k[3], H, H), 'b_o': jnp.zeros((1, H), jnp.float32),
            'ln2_g': jnp.ones((1, H), jnp.float32), 'ln2_b': jnp.zeros((1, H), jnp.float32),
            'w1': xavier_uniform(k[4], H, MLP_RATIO * H),
            'b1': jnp.zeros((1, MLP_RATIO * H), jnp.float32),
            'w2': xavier_uniform(k[5], MLP_RATIO * H, H),
            'b2': jnp.zeros((1, H), jnp.float32),
        })
    # stack per-layer tensors along a leading layer axis (streamed by the layer grid axis)
    for name in layers[0]:
        params[name] = jnp.stack([lyr[name] for lyr in layers], axis=0).astype(jnp.float32)
    return params


def build_causal_mask(max_dof):
    T = (max_dof + 1) * 2 + 1
    m = jnp.triu(jnp.ones((T, T), jnp.float32), k=1)
    m = jnp.where(m == 1.0, jnp.float32(NEG_INF), jnp.float32(0.0))
    m = m.at[:, max_dof + 1:].set(0.0)          # columns past the delta-query block unmasked
    return m


# ------------------------------ main ------------------------------

if __name__ == "__main__":
    config = dict(hidden_dim=32, num_heads=4, num_layers=2, max_dof=3)
    B = 2
    max_dof = config['max_dof']
    L = max_dof + 1                              # tokens per pose group
    T = (max_dof + 1) * 2 + 1                    # num_tokens = 9

    key = jax.random.PRNGKey(0)
    kp, kr, kt, kf = jax.random.split(key, 4)
    params = init_params(kp, config['hidden_dim'], config['num_heads'],
                         config['num_layers'], config['max_dof'])
    # initialize_weights() zeroes the final layer (output would be identically 0);
    # give it non-zero weights in the smoke test so the kernel-vs-reference check is meaningful.
    params['w_final'] = xavier_uniform(kf, config['hidden_dim'], 9)

    ref_link_poses = jax.random.normal(kr, (B, L, 9), jnp.float32)
    target_pose = jax.random.normal(kt, (B, 9), jnp.float32)
    mask = build_causal_mask(max_dof)

    fwd = jax.jit(functools.partial(singlestep_pose_forward, num_heads=config['num_heads']))
    out = fwd(params, ref_link_poses, target_pose, mask)
    jax.block_until_ready(out)
    assert out.shape == (B, T, 9) and out.dtype == jnp.float32

    ref_out = reference_forward(params, ref_link_poses, target_pose, mask,
                                num_heads=config['num_heads'])
    max_err = float(jnp.max(jnp.abs(out - ref_out)))
    assert max_err < 5e-2, f"kernel/reference mismatch: max abs err = {max_err}"
    print("KERNEL_OK")
</pallas_src>

<mosaic_0001>
module attributes {stable_mosaic.version = 11 : i64} {
  func.func @fused_model_kernel(%arg0: i32, %arg1: i32, %arg2: memref<1x4x9xf32, #tpu.memory_space<vmem>>, %arg3: memref<1x1x9xf32, #tpu.memory_space<vmem>>, %arg4: memref<9x32xf32, #tpu.memory_space<vmem>>, %arg5: memref<1x32xf32, #tpu.memory_space<vmem>>, %arg6: memref<9x32xf32, #tpu.memory_space<vmem>>, %arg7: memref<9x9xf32, #tpu.memory_space<vmem>>, %arg8: memref<1x1x32xf32, #tpu.memory_space<vmem>>, %arg9: memref<1x1x32xf32, #tpu.memory_space<vmem>>, %arg10: memref<1x32x96xf32, #tpu.memory_space<vmem>>, %arg11: memref<1x1x96xf32, #tpu.memory_space<vmem>>, %arg12: memref<1x32x32xf32, #tpu.memory_space<vmem>>, %arg13: memref<1x1x32xf32, #tpu.memory_space<vmem>>, %arg14: memref<1x1x32xf32, #tpu.memory_space<vmem>>, %arg15: memref<1x1x32xf32, #tpu.memory_space<vmem>>, %arg16: memref<1x32x128xf32, #tpu.memory_space<vmem>>, %arg17: memref<1x1x128xf32, #tpu.memory_space<vmem>>, %arg18: memref<1x128x32xf32, #tpu.memory_space<vmem>>, %arg19: memref<1x1x32xf32, #tpu.memory_space<vmem>>, %arg20: memref<32x9xf32, #tpu.memory_space<vmem>>, %arg21: memref<1x9xf32, #tpu.memory_space<vmem>>, %arg22: memref<1x9x9xf32, #tpu.memory_space<vmem>>, %arg23: memref<9x32xf32, #tpu.memory_space<vmem>>) attributes {dimension_semantics = [#tpu.dimension_semantics<parallel>, #tpu.dimension_semantics<arbitrary>], iteration_bounds = array<i64: 2, 2>, scalar_prefetch = 0 : i64, scratch_operands = 1 : i64, tpu.core_type = #tpu.core_type<tc>, window_params = [{transform_indices = @transform_0, window_bounds = array<i64: 1, 4, 9>}, {transform_indices = @transform_1, window_bounds = array<i64: 1, 1, 9>}, {pipeline_mode = #tpu.pipeline_mode<synchronous>, transform_indices = @transform_2, window_bounds = array<i64: 9, 32>}, {pipeline_mode = #tpu.pipeline_mode<synchronous>, transform_indices = @transform_3, window_bounds = array<i64: 1, 32>}, {pipeline_mode = #tpu.pipeline_mode<synchronous>, transform_indices = @transform_4, window_bounds = array<i64: 9, 32>}, {pipeline_mode = #tpu.pipeline_mode<synchronous>, transform_indices = @transform_5, window_bounds = array<i64: 9, 9>}, {transform_indices = @transform_6, window_bounds = array<i64: 1, 1, 32>}, {transform_indices = @transform_7, window_bounds = array<i64: 1, 1, 32>}, {transform_indices = @transform_8, window_bounds = array<i64: 1, 32, 96>}, {transform_indices = @transform_9, window_bounds = array<i64: 1, 1, 96>}, {transform_indices = @transform_10, window_bounds = array<i64: 1, 32, 32>}, {transform_indices = @transform_11, window_bounds = array<i64: 1, 1, 32>}, {transform_indices = @transform_12, window_bounds = array<i64: 1, 1, 32>}, {transform_indices = @transform_13, window_bounds = array<i64: 1, 1, 32>}, {transform_indices = @transform_14, window_bounds = array<i64: 1, 32, 128>}, {transform_indices = @transform_15, window_bounds = array<i64: 1, 1, 128>}, {transform_indices = @transform_16, window_bounds = array<i64: 1, 128, 32>}, {transform_indices = @transform_17, window_bounds = array<i64: 1, 1, 32>}, {pipeline_mode = #tpu.pipeline_mode<synchronous>, transform_indices = @transform_18, window_bounds = array<i64: 32, 9>}, {pipeline_mode = #tpu.pipeline_mode<synchronous>, transform_indices = @transform_19, window_bounds = array<i64: 1, 9>}, {transform_indices = @transform_20, window_bounds = array<i64: 1, 9, 9>}]} {
    %c0_i32 = arith.constant 0 : i32
    %0 = arith.cmpi eq, %arg1, %c0_i32 : i32
    %1 = arith.extui %0 : i1 to i32
    %c0_i32_0 = arith.constant 0 : i32
    %2 = arith.cmpi ne, %1, %c0_i32_0 : i32
    scf.if %2 {
      %c0_74 = arith.constant 0 : index
      %c0_75 = arith.constant 0 : index
      %151 = vector.load %arg4[%c0_74, %c0_75] : memref<9x32xf32, #tpu.memory_space<vmem>>, vector<9x32xf32>
      %c0_76 = arith.constant 0 : index
      %c0_77 = arith.constant 0 : index
      %152 = vector.load %arg5[%c0_76, %c0_77] : memref<1x32xf32, #tpu.memory_space<vmem>>, vector<1x32xf32>
      %c0_78 = arith.constant 0 : index
      %c0_79 = arith.constant 0 : index
      %c0_80 = arith.constant 0 : index
      %153 = vector.load %arg2[%c0_78, %c0_79, %c0_80] : memref<1x4x9xf32, #tpu.memory_space<vmem>>, vector<1x4x9xf32>
      %154 = vector.shape_cast %153 : vector<1x4x9xf32> to vector<4x9xf32>
      %cst_81 = arith.constant dense<0.000000e+00> : vector<4x32xf32>
      %155 = tpu.matmul %154, %151, %cst_81 {dimension_numbers = #tpu.dot_dimension_numbers<[1], [0], [0], [1], [0, 0, 1, 1], [], []>} : vector<4x9xf32>, vector<9x32xf32>, vector<4x32xf32> -> vector<4x32xf32>
      %156 = vector.broadcast %152 : vector<1x32xf32> to vector<4x32xf32>
      %157 = arith.addf %155, %156 : vector<4x32xf32>
      %c0_82 = arith.constant 0 : index
      %c0_83 = arith.constant 0 : index
      %c0_84 = arith.constant 0 : index
      %158 = vector.load %arg3[%c0_82, %c0_83, %c0_84] : memref<1x1x9xf32, #tpu.memory_space<vmem>>, vector<1x1x9xf32>
      %159 = vector.shape_cast %158 : vector<1x1x9xf32> to vector<1x9xf32>
      %cst_85 = arith.constant dense<0.000000e+00> : vector<1x32xf32>
      %160 = tpu.matmul %159, %151, %cst_85 {dimension_numbers = #tpu.dot_dimension_numbers<[1], [0], [0], [1], [0, 0, 1, 1], [], []>} : vector<1x9xf32>, vector<9x32xf32>, vector<1x32xf32> -> vector<1x32xf32>
      %161 = arith.addf %160, %152 : vector<1x32xf32>
      %c0_86 = arith.constant 0 : index
      %c0_87 = arith.constant 0 : index
      %162 = vector.load %arg6[%c0_86, %c0_87] : memref<9x32xf32, #tpu.memory_space<vmem>>, vector<4x32xf32>
      %c0_88 = arith.constant 0 : index
      %c0_89 = arith.constant 0 : index
      %163 = vector.load %arg23[%c0_88, %c0_89] : memref<9x32xf32, #tpu.memory_space<vmem>>, vector<4x32xf32>
      tpu.vector_store %arg23[%c0_88, %c0_89], %162 {strides = array<i32>} : memref<9x32xf32, #tpu.memory_space<vmem>>, vector<4x32xf32>,
      %c4 = arith.constant 4 : index
      %c0_90 = arith.constant 0 : index
      %164 = vector.load %arg6[%c4, %c0_90] : memref<9x32xf32, #tpu.memory_space<vmem>>, vector<4x32xf32>
      %165 = arith.addf %157, %164 : vector<4x32xf32>
      %c4_91 = arith.constant 4 : index
      %c0_92 = arith.constant 0 : index
      %166 = vector.load %arg23[%c4_91, %c0_92] : memref<9x32xf32, #tpu.memory_space<vmem>>, vector<4x32xf32>
      tpu.vector_store %arg23[%c4_91, %c0_92], %165 {strides = array<i32>} : memref<9x32xf32, #tpu.memory_space<vmem>>, vector<4x32xf32>,
      %c8 = arith.constant 8 : index
      %c0_93 = arith.constant 0 : index
      %167 = vector.load %arg6[%c8, %c0_93] : memref<9x32xf32, #tpu.memory_space<vmem>>, vector<1x32xf32>
      %168 = arith.addf %161, %167 : vector<1x32xf32>
      %c8_94 = arith.constant 8 : index
      %c0_95 = arith.constant 0 : index
      %169 = vector.load %arg23[%c8_94, %c0_95] : memref<9x32xf32, #tpu.memory_space<vmem>>, vector<1x32xf32>
      tpu.vector_store %arg23[%c8_94, %c0_95], %168 {strides = array<i32>} : memref<9x32xf32, #tpu.memory_space<vmem>>, vector<1x32xf32>,
    } else {
    }
    %c0 = arith.constant 0 : index
    %c0_1 = arith.constant 0 : index
    %3 = vector.load %arg23[%c0, %c0_1] : memref<9x32xf32, #tpu.memory_space<vmem>>, vector<9x32xf32>
    %c0_2 = arith.constant 0 : index
    %c0_3 = arith.constant 0 : index
    %4 = vector.load %arg7[%c0_2, %c0_3] : memref<9x9xf32, #tpu.memory_space<vmem>>, vector<9x9xf32>
    %c0_4 = arith.constant 0 : index
    %c0_5 = arith.constant 0 : index
    %c0_6 = arith.constant 0 : index
    %5 = vector.load %arg8[%c0_4, %c0_5, %c0_6] : memref<1x1x32xf32, #tpu.memory_space<vmem>>, vector<1x1x32xf32>
    %6 = vector.shape_cast %5 : vector<1x1x32xf32> to vector<1x32xf32>
    %c0_7 = arith.constant 0 : index
    %c0_8 = arith.constant 0 : index
    %c0_9 = arith.constant 0 : index
    %7 = vector.load %arg9[%c0_7, %c0_8, %c0_9] : memref<1x1x32xf32, #tpu.memory_space<vmem>>, vector<1x1x32xf32>
    %8 = vector.shape_cast %7 : vector<1x1x32xf32> to vector<1x32xf32>
    %cst = arith.constant dense<0.000000e+00> : vector<9xf32>
    %9 = vector.multi_reduction <add>, %3, %cst [1] : vector<9x32xf32> to vector<9xf32>
    %10 = vector.shape_cast %9 : vector<9xf32> to vector<9x1xf32>
    %cst_10 = arith.constant 3.200000e+01 : f32
    %11 = vector.broadcast %cst_10 : f32 to vector<9x1xf32>
    %12 = arith.divf %10, %11 : vector<9x1xf32>
    %13 = vector.broadcast %12 : vector<9x1xf32> to vector<9x32xf32>
    %14 = arith.subf %3, %13 : vector<9x32xf32>
    %15 = arith.mulf %14, %14 : vector<9x32xf32>
    %cst_11 = arith.constant dense<0.000000e+00> : vector<9xf32>
    %16 = vector.multi_reduction <add>, %15, %cst_11 [1] : vector<9x32xf32> to vector<9xf32>
    %17 = vector.shape_cast %16 : vector<9xf32> to vector<9x1xf32>
    %cst_12 = arith.constant 3.200000e+01 : f32
    %18 = vector.broadcast %cst_12 : f32 to vector<9x1xf32>
    %19 = arith.divf %17, %18 : vector<9x1xf32>
    %cst_13 = arith.constant 9.99999974E-6 : f32
    %20 = vector.broadcast %cst_13 : f32 to vector<9x1xf32>
    %21 = arith.addf %19, %20 : vector<9x1xf32>
    %22 = math.rsqrt %21 : vector<9x1xf32>
    %23 = vector.broadcast %22 : vector<9x1xf32> to vector<9x32xf32>
    %24 = arith.mulf %14, %23 : vector<9x32xf32>
    %25 = vector.broadcast %6 : vector<1x32xf32> to vector<9x32xf32>
    %26 = arith.mulf %24, %25 : vector<9x32xf32>
    %27 = vector.broadcast %8 : vector<1x32xf32> to vector<9x32xf32>
    %28 = arith.addf %26, %27 : vector<9x32xf32>
    %c0_14 = arith.constant 0 : index
    %c0_15 = arith.constant 0 : index
    %c0_16 = arith.constant 0 : index
    %29 = vector.load %arg10[%c0_14, %c0_15, %c0_16] : memref<1x32x96xf32, #tpu.memory_space<vmem>>, vector<1x32x96xf32>
    %30 = vector.shape_cast %29 : vector<1x32x96xf32> to vector<32x96xf32>
    %cst_17 = arith.constant dense<0.000000e+00> : vector<9x96xf32>
    %31 = tpu.matmul %28, %30, %cst_17 {dimension_numbers = #tpu.dot_dimension_numbers<[1], [0], [0], [1], [0, 0, 1, 1], [], []>} : vector<9x32xf32>, vector<32x96xf32>, vector<9x96xf32> -> vector<9x96xf32>
    %c0_18 = arith.constant 0 : index
    %c0_19 = arith.constant 0 : index
    %c0_20 = arith.constant 0 : index
    %32 = vector.load %arg11[%c0_18, %c0_19, %c0_20] : memref<1x1x96xf32, #tpu.memory_space<vmem>>, vector<1x1x96xf32>
    %33 = vector.shape_cast %32 : vector<1x1x96xf32> to vector<1x96xf32>
    %34 = vector.broadcast %33 : vector<1x96xf32> to vector<9x96xf32>
    %35 = arith.addf %31, %34 : vector<9x96xf32>
    %36 = vector.extract_strided_slice %35 {offsets = [0, 0], sizes = [9, 8], strides = [1, 1]} : vector<9x96xf32> to vector<9x8xf32>
    %37 = vector.extract_strided_slice %35 {offsets = [0, 32], sizes = [9, 8], strides = [1, 1]} : vector<9x96xf32> to vector<9x8xf32>
    %38 = tpu.transpose %37, [1, 0] : vector<9x8xf32> -> vector<8x9xf32>
    %cst_21 = arith.constant dense<0.000000e+00> : vector<9x9xf32>
    %39 = tpu.matmul %36, %38, %cst_21 {dimension_numbers = #tpu.dot_dimension_numbers<[1], [0], [0], [1], [0, 0, 1, 1], [], []>} : vector<9x8xf32>, vector<8x9xf32>, vector<9x9xf32> -> vector<9x9xf32>
    %cst_22 = arith.constant 0.353553385 : f32
    %40 = vector.broadcast %cst_22 : f32 to vector<9x9xf32>
    %41 = arith.mulf %39, %40 : vector<9x9xf32>
    %42 = arith.addf %41, %4 : vector<9x9xf32>
    %43 = vector.extract_strided_slice %35 {offsets = [0, 8], sizes = [9, 8], strides = [1, 1]} : vector<9x96xf32> to vector<9x8xf32>
    %44 = vector.extract_strided_slice %35 {offsets = [0, 40], sizes = [9, 8], strides = [1, 1]} : vector<9x96xf32> to vector<9x8xf32>
    %45 = tpu.transpose %44, [1, 0] : vector<9x8xf32> -> vector<8x9xf32>
    %cst_23 = arith.constant dense<0.000000e+00> : vector<9x9xf32>
    %46 = tpu.matmul %43, %45, %cst_23 {dimension_numbers = #tpu.dot_dimension_numbers<[1], [0], [0], [1], [0, 0, 1, 1], [], []>} : vector<9x8xf32>, vector<8x9xf32>, vector<9x9xf32> -> vector<9x9xf32>
    %cst_24 = arith.constant 0.353553385 : f32
    %47 = vector.broadcast %cst_24 : f32 to vector<9x9xf32>
    %48 = arith.mulf %46, %47 : vector<9x9xf32>
    %49 = arith.addf %48, %4 : vector<9x9xf32>
    %50 = vector.extract_strided_slice %35 {offsets = [0, 16], sizes = [9, 8], strides = [1, 1]} : vector<9x96xf32> to vector<9x8xf32>
    %51 = vector.extract_strided_slice %35 {offsets = [0, 48], sizes = [9, 8], strides = [1, 1]} : vector<9x96xf32> to vector<9x8xf32>
    %52 = tpu.transpose %51, [1, 0] : vector<9x8xf32> -> vector<8x9xf32>
    %cst_25 = arith.constant dense<0.000000e+00> : vector<9x9xf32>
    %53 = tpu.matmul %50, %52, %cst_25 {dimension_numbers = #tpu.dot_dimension_numbers<[1], [0], [0], [1], [0, 0, 1, 1], [], []>} : vector<9x8xf32>, vector<8x9xf32>, vector<9x9xf32> -> vector<9x9xf32>
    %cst_26 = arith.constant 0.353553385 : f32
    %54 = vector.broadcast %cst_26 : f32 to vector<9x9xf32>
    %55 = arith.mulf %53, %54 : vector<9x9xf32>
    %56 = arith.addf %55, %4 : vector<9x9xf32>
    %57 = vector.extract_strided_slice %35 {offsets = [0, 24], sizes = [9, 8], strides = [1, 1]} : vector<9x96xf32> to vector<9x8xf32>
    %58 = vector.extract_strided_slice %35 {offsets = [0, 56], sizes = [9, 8], strides = [1, 1]} : vector<9x96xf32> to vector<9x8xf32>
    %59 = tpu.transpose %58, [1, 0] : vector<9x8xf32> -> vector<8x9xf32>
    %cst_27 = arith.constant dense<0.000000e+00> : vector<9x9xf32>
    %60 = tpu.matmul %57, %59, %cst_27 {dimension_numbers = #tpu.dot_dimension_numbers<[1], [0], [0], [1], [0, 0, 1, 1], [], []>} : vector<9x8xf32>, vector<8x9xf32>, vector<9x9xf32> -> vector<9x9xf32>
    %cst_28 = arith.constant 0.353553385 : f32
    %61 = vector.broadcast %cst_28 : f32 to vector<9x9xf32>
    %62 = arith.mulf %60, %61 : vector<9x9xf32>
    %63 = arith.addf %62, %4 : vector<9x9xf32>
    %64 = tpu.concatenate %42, %49, %56, %63 in 0 : vector<9x9xf32>, vector<9x9xf32>, vector<9x9xf32>, vector<9x9xf32> -> vector<36x9xf32>
    %cst_29 = arith.constant dense<0xFF800000> : vector<36xf32>
    %65 = vector.multi_reduction <maximumf>, %64, %cst_29 [1] : vector<36x9xf32> to vector<36xf32>
    %66 = vector.shape_cast %65 : vector<36xf32> to vector<36x1xf32>
    %67 = vector.broadcast %66 : vector<36x1xf32> to vector<36x9xf32>
    %68 = arith.subf %64, %67 : vector<36x9xf32>
    %69 = math.exp %68 : vector<36x9xf32>
    %cst_30 = arith.constant dense<0.000000e+00> : vector<36xf32>
    %70 = vector.multi_reduction <add>, %69, %cst_30 [1] : vector<36x9xf32> to vector<36xf32>
    %71 = vector.shape_cast %70 : vector<36xf32> to vector<36x1xf32>
    %72 = vector.broadcast %71 : vector<36x1xf32> to vector<36x9xf32>
    %73 = arith.divf %69, %72 : vector<36x9xf32>
    %74 = vector.extract_strided_slice %35 {offsets = [0, 64], sizes = [9, 8], strides = [1, 1]} : vector<9x96xf32> to vector<9x8xf32>
    %75 = vector.extract_strided_slice %73 {offsets = [0, 0], sizes = [9, 9], strides = [1, 1]} : vector<36x9xf32> to vector<9x9xf32>
    %cst_31 = arith.constant dense<0.000000e+00> : vector<9x8xf32>
    %76 = tpu.matmul %75, %74, %cst_31 {dimension_numbers = #tpu.dot_dimension_numbers<[1], [0], [0], [1], [0, 0, 1, 1], [], []>} : vector<9x9xf32>, vector<9x8xf32>, vector<9x8xf32> -> vector<9x8xf32>
    %77 = vector.extract_strided_slice %35 {offsets = [0, 72], sizes = [9, 8], strides = [1, 1]} : vector<9x96xf32> to vector<9x8xf32>
    %78 = vector.extract_strided_slice %73 {offsets = [9, 0], sizes = [9, 9], strides = [1, 1]} : vector<36x9xf32> to vector<9x9xf32>
    %cst_32 = arith.constant dense<0.000000e+00> : vector<9x8xf32>
    %79 = tpu.matmul %78, %77, %cst_32 {dimension_numbers = #tpu.dot_dimension_numbers<[1], [0], [0], [1], [0, 0, 1, 1], [], []>} : vector<9x9xf32>, vector<9x8xf32>, vector<9x8xf32> -> vector<9x8xf32>
    %80 = vector.extract_strided_slice %35 {offsets = [0, 80], sizes = [9, 8], strides = [1, 1]} : vector<9x96xf32> to vector<9x8xf32>
    %81 = vector.extract_strided_slice %73 {offsets = [18, 0], sizes = [9, 9], strides = [1, 1]} : vector<36x9xf32> to vector<9x9xf32>
    %cst_33 = arith.constant dense<0.000000e+00> : vector<9x8xf32>
    %82 = tpu.matmul %81, %80, %cst_33 {dimension_numbers = #tpu.dot_dimension_numbers<[1], [0], [0], [1], [0, 0, 1, 1], [], []>} : vector<9x9xf32>, vector<9x8xf32>, vector<9x8xf32> -> vector<9x8xf32>
    %83 = vector.extract_strided_slice %35 {offsets = [0, 88], sizes = [9, 8], strides = [1, 1]} : vector<9x96xf32> to vector<9x8xf32>
    %84 = vector.extract_strided_slice %73 {offsets = [27, 0], sizes = [9, 9], strides = [1, 1]} : vector<36x9xf32> to vector<9x9xf32>
    %cst_34 = arith.constant dense<0.000000e+00> : vector<9x8xf32>
    %85 = tpu.matmul %84, %83, %cst_34 {dimension_numbers = #tpu.dot_dimension_numbers<[1], [0], [0], [1], [0, 0, 1, 1], [], []>} : vector<9x9xf32>, vector<9x8xf32>, vector<9x8xf32> -> vector<9x8xf32>
    %86 = tpu.concatenate %76, %79, %82, %85 in 1 : vector<9x8xf32>, vector<9x8xf32>, vector<9x8xf32>, vector<9x8xf32> -> vector<9x32xf32>
    %c0_35 = arith.constant 0 : index
    %c0_36 = arith.constant 0 : index
    %c0_37 = arith.constant 0 : index
    %87 = vector.load %arg12[%c0_35, %c0_36, %c0_37] : memref<1x32x32xf32, #tpu.memory_space<vmem>>, vector<1x32x32xf32>
    %88 = vector.shape_cast %87 : vector<1x32x32xf32> to vector<32x32xf32>
    %cst_38 = arith.constant dense<0.000000e+00> : vector<9x32xf32>
    %89 = tpu.matmul %86, %88, %cst_38 {dimension_numbers = #tpu.dot_dimension_numbers<[1], [0], [0], [1], [0, 0, 1, 1], [], []>} : vector<9x32xf32>, vector<32x32xf32>, vector<9x32xf32> -> vector<9x32xf32>
    %c0_39 = arith.constant 0 : index
    %c0_40 = arith.constant 0 : index
    %c0_41 = arith.constant 0 : index
    %90 = vector.load %arg13[%c0_39, %c0_40, %c0_41] : memref<1x1x32xf32, #tpu.memory_space<vmem>>, vector<1x1x32xf32>
    %91 = vector.shape_cast %90 : vector<1x1x32xf32> to vector<1x32xf32>
    %92 = vector.broadcast %91 : vector<1x32xf32> to vector<9x32xf32>
    %93 = arith.addf %89, %92 : vector<9x32xf32>
    %94 = arith.addf %3, %93 : vector<9x32xf32>
    %c0_42 = arith.constant 0 : index
    %c0_43 = arith.constant 0 : index
    %c0_44 = arith.constant 0 : index
    %95 = vector.load %arg14[%c0_42, %c0_43, %c0_44] : memref<1x1x32xf32, #tpu.memory_space<vmem>>, vector<1x1x32xf32>
    %96 = vector.shape_cast %95 : vector<1x1x32xf32> to vector<1x32xf32>
    %c0_45 = arith.constant 0 : index
    %c0_46 = arith.constant 0 : index
    %c0_47 = arith.constant 0 : index
    %97 = vector.load %arg15[%c0_45, %c0_46, %c0_47] : memref<1x1x32xf32, #tpu.memory_space<vmem>>, vector<1x1x32xf32>
    %98 = vector.shape_cast %97 : vector<1x1x32xf32> to vector<1x32xf32>
    %cst_48 = arith.constant dense<0.000000e+00> : vector<9xf32>
    %99 = vector.multi_reduction <add>, %94, %cst_48 [1] : vector<9x32xf32> to vector<9xf32>
    %100 = vector.shape_cast %99 : vector<9xf32> to vector<9x1xf32>
    %cst_49 = arith.constant 3.200000e+01 : f32
    %101 = vector.broadcast %cst_49 : f32 to vector<9x1xf32>
    %102 = arith.divf %100, %101 : vector<9x1xf32>
    %103 = vector.broadcast %102 : vector<9x1xf32> to vector<9x32xf32>
    %104 = arith.subf %94, %103 : vector<9x32xf32>
    %105 = arith.mulf %104, %104 : vector<9x32xf32>
    %cst_50 = arith.constant dense<0.000000e+00> : vector<9xf32>
    %106 = vector.multi_reduction <add>, %105, %cst_50 [1] : vector<9x32xf32> to vector<9xf32>
    %107 = vector.shape_cast %106 : vector<9xf32> to vector<9x1xf32>
    %cst_51 = arith.constant 3.200000e+01 : f32
    %108 = vector.broadcast %cst_51 : f32 to vector<9x1xf32>
    %109 = arith.divf %107, %108 : vector<9x1xf32>
    %cst_52 = arith.constant 9.99999974E-6 : f32
    %110 = vector.broadcast %cst_52 : f32 to vector<9x1xf32>
    %111 = arith.addf %109, %110 : vector<9x1xf32>
    %112 = math.rsqrt %111 : vector<9x1xf32>
    %113 = vector.broadcast %112 : vector<9x1xf32> to vector<9x32xf32>
    %114 = arith.mulf %104, %113 : vector<9x32xf32>
    %115 = vector.broadcast %96 : vector<1x32xf32> to vector<9x32xf32>
    %116 = arith.mulf %114, %115 : vector<9x32xf32>
    %117 = vector.broadcast %98 : vector<1x32xf32> to vector<9x32xf32>
    %118 = arith.addf %116, %117 : vector<9x32xf32>
    %c0_53 = arith.constant 0 : index
    %c0_54 = arith.constant 0 : index
    %c0_55 = arith.constant 0 : index
    %119 = vector.load %arg16[%c0_53, %c0_54, %c0_55] : memref<1x32x128xf32, #tpu.memory_space<vmem>>, vector<1x32x128xf32>
    %120 = vector.shape_cast %119 : vector<1x32x128xf32> to vector<32x128xf32>
    %cst_56 = arith.constant dense<0.000000e+00> : vector<9x128xf32>
    %121 = tpu.matmul %118, %120, %cst_56 {dimension_numbers = #tpu.dot_dimension_numbers<[1], [0], [0], [1], [0, 0, 1, 1], [], []>} : vector<9x32xf32>, vector<32x128xf32>, vector<9x128xf32> -> vector<9x128xf32>
    %c0_57 = arith.constant 0 : index
    %c0_58 = arith.constant 0 : index
    %c0_59 = arith.constant 0 : index
    %122 = vector.load %arg17[%c0_57, %c0_58, %c0_59] : memref<1x1x128xf32, #tpu.memory_space<vmem>>, vector<1x1x128xf32>
    %123 = vector.shape_cast %122 : vector<1x1x128xf32> to vector<1x128xf32>
    %124 = vector.broadcast %123 : vector<1x128xf32> to vector<9x128xf32>
    %125 = arith.addf %121, %124 : vector<9x128xf32>
    %cst_60 = arith.constant 5.000000e-01 : f32
    %126 = vector.broadcast %cst_60 : f32 to vector<9x128xf32>
    %127 = arith.mulf %126, %125 : vector<9x128xf32>
    %cst_61 = arith.constant 4.471500e-02 : f32
    %128 = vector.broadcast %cst_61 : f32 to vector<9x128xf32>
    %129 = arith.mulf %128, %125 : vector<9x128xf32>
    %130 = arith.mulf %129, %125 : vector<9x128xf32>
    %131 = arith.mulf %130, %125 : vector<9x128xf32>
    %132 = arith.addf %125, %131 : vector<9x128xf32>
    %cst_62 = arith.constant 0.797884583 : f32
    %133 = vector.broadcast %cst_62 : f32 to vector<9x128xf32>
    %134 = arith.mulf %133, %132 : vector<9x128xf32>
    %135 = math.tanh %134 : vector<9x128xf32>
    %cst_63 = arith.constant 1.000000e+00 : f32
    %136 = vector.broadcast %cst_63 : f32 to vector<9x128xf32>
    %137 = arith.addf %136, %135 : vector<9x128xf32>
    %138 = arith.mulf %127, %137 : vector<9x128xf32>
    %c0_64 = arith.constant 0 : index
    %c0_65 = arith.constant 0 : index
    %c0_66 = arith.constant 0 : index
    %139 = vector.load %arg18[%c0_64, %c0_65, %c0_66] : memref<1x128x32xf32, #tpu.memory_space<vmem>>, vector<1x128x32xf32>
    %140 = vector.shape_cast %139 : vector<1x128x32xf32> to vector<128x32xf32>
    %cst_67 = arith.constant dense<0.000000e+00> : vector<9x32xf32>
    %141 = tpu.matmul %138, %140, %cst_67 {dimension_numbers = #tpu.dot_dimension_numbers<[1], [0], [0], [1], [0, 0, 1, 1], [], []>} : vector<9x128xf32>, vector<128x32xf32>, vector<9x32xf32> -> vector<9x32xf32>
    %142 = arith.addf %94, %141 : vector<9x32xf32>
    %c0_68 = arith.constant 0 : index
    %c0_69 = arith.constant 0 : index
    %c0_70 = arith.constant 0 : index
    %143 = vector.load %arg19[%c0_68, %c0_69, %c0_70] : memref<1x1x32xf32, #tpu.memory_space<vmem>>, vector<1x1x32xf32>
    %144 = vector.shape_cast %143 : vector<1x1x32xf32> to vector<1x32xf32>
    %145 = vector.broadcast %144 : vector<1x32xf32> to vector<9x32xf32>
    %146 = arith.addf %142, %145 : vector<9x32xf32>
    %c0_71 = arith.constant 0 : index
    %c0_72 = arith.constant 0 : index
    %147 = vector.load %arg23[%c0_71, %c0_72] : memref<9x32xf32, #tpu.memory_space<vmem>>, vector<9x32xf32>
    tpu.vector_store %arg23[%c0_71, %c0_72], %146 {strides = array<i32>} : memref<9x32xf32, #tpu.memory_space<vmem>>, vector<9x32xf32>,
    %c1_i32 = arith.constant 1 : i32
    %148 = arith.cmpi eq, %arg1, %c1_i32 : i32
    %149 = arith.extui %148 : i1 to i32
    %c0_i32_73 = arith.constant 0 : i32
    %150 = arith.cmpi ne, %149, %c0_i32_73 : i32
    scf.if %150 {
      %c0_74 = arith.constant 0 : index
      %c0_75 = arith.constant 0 : index
      %151 = vector.load %arg20[%c0_74, %c0_75] : memref<32x9xf32, #tpu.memory_space<vmem>>, vector<32x9xf32>
      %cst_76 = arith.constant dense<0.000000e+00> : vector<9x9xf32>
      %152 = tpu.matmul %146, %151, %cst_76 {dimension_numbers = #tpu.dot_dimension_numbers<[1], [0], [0], [1], [0, 0, 1, 1], [], []>} : vector<9x32xf32>, vector<32x9xf32>, vector<9x9xf32> -> vector<9x9xf32>
      %c0_77 = arith.constant 0 : index
      %c0_78 = arith.constant 0 : index
      %153 = vector.load %arg21[%c0_77, %c0_78] : memref<1x9xf32, #tpu.memory_space<vmem>>, vector<1x9xf32>
      %154 = vector.broadcast %153 : vector<1x9xf32> to vector<9x9xf32>
      %155 = arith.addf %152, %154 : vector<9x9xf32>
      %c0_79 = arith.constant 0 : index
      %c0_80 = arith.constant 0 : index
      %c0_81 = arith.constant 0 : index
      %156 = vector.load %arg22[%c0_79, %c0_80, %c0_81] : memref<1x9x9xf32, #tpu.memory_space<vmem>>, vector<1x9x9xf32>
      %157 = vector.shape_cast %156 : vector<1x9x9xf32> to vector<9x9xf32>
      %158 = vector.shape_cast %155 : vector<9x9xf32> to vector<1x9x9xf32>
      tpu.vector_store %arg22[%c0_79, %c0_80, %c0_81], %158 {strides = array<i32>} : memref<1x9x9xf32, #tpu.memory_space<vmem>>, vector<1x9x9xf32>,
    } else {
    }
    return
  }
  func.func @transform_0(%arg0: i32, %arg1: i32) -> (i32, i32, i32) {
    %c0_i32 = arith.constant 0 : i32
    %c0_i32_0 = arith.constant 0 : i32
    %c0_i32_1 = arith.constant 0 : i32
    return %arg0, %c0_i32, %c0_i32_0 : i32, i32, i32
  }
  func.func @transform_1(%arg0: i32, %arg1: i32) -> (i32, i32, i32) {
    %c0_i32 = arith.constant 0 : i32
    %c0_i32_0 = arith.constant 0 : i32
    %c0_i32_1 = arith.constant 0 : i32
    return %arg0, %c0_i32, %c0_i32_0 : i32, i32, i32
  }
  func.func @transform_2(%arg0: i32, %arg1: i32) -> (i32, i32) {
    %c0_i32 = arith.constant 0 : i32
    %c0_i32_0 = arith.constant 0 : i32
    %c0_i32_1 = arith.constant 0 : i32
    return %c0_i32, %c0_i32_0 : i32, i32
  }
  func.func @transform_3(%arg0: i32, %arg1: i32) -> (i32, i32) {
    %c0_i32 = arith.constant 0 : i32
    %c0_i32_0 = arith.constant 0 : i32
    %c0_i32_1 = arith.constant 0 : i32
    return %c0_i32, %c0_i32_0 : i32, i32
  }
  func.func @transform_4(%arg0: i32, %arg1: i32) -> (i32, i32) {
    %c0_i32 = arith.constant 0 : i32
    %c0_i32_0 = arith.constant 0 : i32
    %c0_i32_1 = arith.constant 0 : i32
    return %c0_i32, %c0_i32_0 : i32, i32
  }
  func.func @transform_5(%arg0: i32, %arg1: i32) -> (i32, i32) {
    %c0_i32 = arith.constant 0 : i32
    %c0_i32_0 = arith.constant 0 : i32
    %c0_i32_1 = arith.constant 0 : i32
    return %c0_i32, %c0_i32_0 : i32, i32
  }
  func.func @transform_6(%arg0: i32, %arg1: i32) -> (i32, i32, i32) {
    %c0_i32 = arith.constant 0 : i32
    %c0_i32_0 = arith.constant 0 : i32
    %c0_i32_1 = arith.constant 0 : i32
    return %arg1, %c0_i32, %c0_i32_0 : i32, i32, i32
  }
  func.func @transform_7(%arg0: i32, %arg1: i32) -> (i32, i32, i32) {
    %c0_i32 = arith.constant 0 : i32
    %c0_i32_0 = arith.constant 0 : i32
    %c0_i32_1 = arith.constant 0 : i32
    return %arg1, %c0_i32, %c0_i32_0 : i32, i32, i32
  }
  func.func @transform_8(%arg0: i32, %arg1: i32) -> (i32, i32, i32) {
    %c0_i32 = arith.constant 0 : i32
    %c0_i32_0 = arith.constant 0 : i32
    %c0_i32_1 = arith.constant 0 : i32
    return %arg1, %c0_i32, %c0_i32_0 : i32, i32, i32
  }
  func.func @transform_9(%arg0: i32, %arg1: i32) -> (i32, i32, i32) {
    %c0_i32 = arith.constant 0 : i32
    %c0_i32_0 = arith.constant 0 : i32
    %c0_i32_1 = arith.constant 0 : i32
    return %arg1, %c0_i32, %c0_i32_0 : i32, i32, i32
  }
  func.func @transform_10(%arg0: i32, %arg1: i32) -> (i32, i32, i32) {
    %c0_i32 = arith.constant 0 : i32
    %c0_i32_0 = arith.constant 0 : i32
    %c0_i32_1 = arith.constant 0 : i32
    return %arg1, %c0_i32, %c0_i32_0 : i32, i32, i32
  }
  func.func @transform_11(%arg0: i32, %arg1: i32) -> (i32, i32, i32) {
    %c0_i32 = arith.constant 0 : i32
    %c0_i32_0 = arith.constant 0 : i32
    %c0_i32_1 = arith.constant 0 : i32
    return %arg1, %c0_i32, %c0_i32_0 : i32, i32, i32
  }
  func.func @transform_12(%arg0: i32, %arg1: i32) -> (i32, i32, i32) {
    %c0_i32 = arith.constant 0 : i32
    %c0_i32_0 = arith.constant 0 : i32
    %c0_i32_1 = arith.constant 0 : i32
    return %arg1, %c0_i32, %c0_i32_0 : i32, i32, i32
  }
  func.func @transform_13(%arg0: i32, %arg1: i32) -> (i32, i32, i32) {
    %c0_i32 = arith.constant 0 : i32
    %c0_i32_0 = arith.constant 0 : i32
    %c0_i32_1 = arith.constant 0 : i32
    return %arg1, %c0_i32, %c0_i32_0 : i32, i32, i32
  }
  func.func @transform_14(%arg0: i32, %arg1: i32) -> (i32, i32, i32) {
    %c0_i32 = arith.constant 0 : i32
    %c0_i32_0 = arith.constant 0 : i32
    %c0_i32_1 = arith.constant 0 : i32
    return %arg1, %c0_i32, %c0_i32_0 : i32, i32, i32
  }
  func.func @transform_15(%arg0: i32, %arg1: i32) -> (i32, i32, i32) {
    %c0_i32 = arith.constant 0 : i32
    %c0_i32_0 = arith.constant 0 : i32
    %c0_i32_1 = arith.constant 0 : i32
    return %arg1, %c0_i32, %c0_i32_0 : i32, i32, i32
  }
  func.func @transform_16(%arg0: i32, %arg1: i32) -> (i32, i32, i32) {
    %c0_i32 = arith.constant 0 : i32
    %c0_i32_0 = arith.constant 0 : i32
    %c0_i32_1 = arith.constant 0 : i32
    return %arg1, %c0_i32, %c0_i32_0 : i32, i32, i32
  }
  func.func @transform_17(%arg0: i32, %arg1: i32) -> (i32, i32, i32) {
    %c0_i32 = arith.constant 0 : i32
    %c0_i32_0 = arith.constant 0 : i32
    %c0_i32_1 = arith.constant 0 : i32
    return %arg1, %c0_i32, %c0_i32_0 : i32, i32, i32
  }
  func.func @transform_18(%arg0: i32, %arg1: i32) -> (i32, i32) {
    %c0_i32 = arith.constant 0 : i32
    %c0_i32_0 = arith.constant 0 : i32
    %c0_i32_1 = arith.constant 0 : i32
    return %c0_i32, %c0_i32_0 : i32, i32
  }
  func.func @transform_19(%arg0: i32, %arg1: i32) -> (i32, i32) {
    %c0_i32 = arith.constant 0 : i32
    %c0_i32_0 = arith.constant 0 : i32
    %c0_i32_1 = arith.constant 0 : i32
    return %c0_i32, %c0_i32_0 : i32, i32
  }
  func.func @transform_20(%arg0: i32, %arg1: i32) -> (i32, i32, i32) {
    %c0_i32 = arith.constant 0 : i32
    %c0_i32_0 = arith.constant 0 : i32
    %c0_i32_1 = arith.constant 0 : i32
    return %arg0, %c0_i32, %c0_i32_0 : i32, i32, i32
  }
}

</mosaic_0001>

<llo_original>
// kernel: singlestep_pose_forward.1
$region0: #{singlestep_pose_forward.1}
  #allocation0 [shape = 'u32[]', space=smem, size = 0x4, offset = 0x4, fixed_abs, tag = 'smem constant byte address 0x4 - core index']
  #allocation1 [shape = 'u32[144,128]{1,0:T(1,128)}', space=vmem, size = 0x12000, scoped, tag = 'internal scratch']
  #allocation2 [shape = 'f32[9,32]{1,0:T(8,128)}', space=vmem, size = 0x2000, scoped, tag = 'scratch operand']
  %s0 = inlined_call_operand.vmem [shape: f32[2,4,9], index: 0, kind: input, shape index: {}]
  %s1 = inlined_call_operand.vmem [shape: f32[2,1,9], index: 1, kind: input, shape index: {}]
  %s2 = inlined_call_operand.vmem [shape: f32[9,32], index: 2, kind: input, shape index: {}]
  %s3 = inlined_call_operand.vmem [shape: f32[1,32], index: 3, kind: input, shape index: {}]
  %s4 = inlined_call_operand.vmem [shape: f32[9,32], index: 4, kind: input, shape index: {}]
  %s5 = inlined_call_operand.vmem [shape: f32[9,9], index: 5, kind: input, shape index: {}]
  %s6 = inlined_call_operand.vmem [shape: f32[2,1,32], index: 6, kind: input, shape index: {}]
  %s7 = inlined_call_operand.vmem [shape: f32[2,1,32], index: 7, kind: input, shape index: {}]
  %s8 = inlined_call_operand.vmem [shape: f32[2,32,96], index: 8, kind: input, shape index: {}]
  %s9 = inlined_call_operand.vmem [shape: f32[2,1,96], index: 9, kind: input, shape index: {}]
  %s10 = inlined_call_operand.vmem [shape: f32[2,32,32], index: 10, kind: input, shape index: {}]
  %s11 = inlined_call_operand.vmem [shape: f32[2,1,32], index: 11, kind: input, shape index: {}]
  %s12 = inlined_call_operand.vmem [shape: f32[2,1,32], index: 12, kind: input, shape index: {}]
  %s13 = inlined_call_operand.vmem [shape: f32[2,1,32], index: 13, kind: input, shape index: {}]
  %s14 = inlined_call_operand.vmem [shape: f32[2,32,128], index: 14, kind: input, shape index: {}]
  %s15 = inlined_call_operand.vmem [shape: f32[2,1,128], index: 15, kind: input, shape index: {}]
  %s16 = inlined_call_operand.vmem [shape: f32[2,128,32], index: 16, kind: input, shape index: {}]
  %s17 = inlined_call_operand.vmem [shape: f32[2,1,32], index: 17, kind: input, shape index: {}]
  %s18 = inlined_call_operand.vmem [shape: f32[32,9], index: 18, kind: input, shape index: {}]
  %s19 = inlined_call_operand.vmem [shape: f32[1,9], index: 19, kind: input, shape index: {}]
  %s20 = inlined_call_operand.vmem [shape: f32[2,9,9], index: 20, kind: output, shape index: {}]
  %s21 = sld [smem:[#allocation0]]
  $region121: #{singlestep_pose_forward.1} parent=0
    _
  %s23 = ssub.s32 1, %s21
  %s24 = scalar_select 0, %s23, %s21
  loop: start=0, step=1, limit=6
  $region2: #{singlestep_pose_forward.1} parent=0 // loop_pre_header
    _
  $region3: #{singlestep_pose_forward.1} parent=0 // loop_header
    %s26 = sphi 0, %s30
    %p27 = scmp.ge.s32.totalorder %s26, 6
    %s33 = sphi 0, %s45
    %s34 = sphi 0, %s41
    %s35 = sphi 0, %s33
    %s36 = sphi 0, %s34
    %s37 = sphi 0, %s35
    %s38 = sphi 0, %s36
    %s48 = sphi 0, %s50
    %s51 = sphi 0, %s48
    %s52 = sphi 0, %s51
    %s68 = sphi 0, %s52
    %s74 = sphi 0, %s76
    %s77 = sphi 0, %s74
    %s78 = sphi 0, %s77
    %s94 = sphi 0, %s78
    %s98 = sphi 0, %s98
    %s100 = sphi 0, %s98
    %s101 = sphi 0, %s100
    %s115 = sphi 0, %s101
    %s119 = sphi 0, %s119
    %s121 = sphi 0, %s119
    %s122 = sphi 0, %s121
    %s136 = sphi 0, %s122
    %s140 = sphi 0, %s140
    %s142 = sphi 0, %s140
    %s143 = sphi 0, %s142
    %s157 = sphi 0, %s143
    %s161 = sphi 0, %s161
    %s163 = sphi 0, %s161
    %s164 = sphi 0, %s163
    %s178 = sphi 0, %s164
    %s184 = sphi 0, %s186
    %s187 = sphi 0, %s184
    %s188 = sphi 0, %s187
    %s204 = sphi 0, %s188
    %s210 = sphi 0, %s212
    %s213 = sphi 0, %s210
    %s214 = sphi 0, %s213
    %s230 = sphi 0, %s214
    %s236 = sphi 0, %s238
    %s239 = sphi 0, %s236
    %s240 = sphi 0, %s239
    %s256 = sphi 0, %s240
    %s262 = sphi 0, %s264
    %s265 = sphi 0, %s262
    %s266 = sphi 0, %s265
    %s282 = sphi 0, %s266
    %s288 = sphi 0, %s290
    %s291 = sphi 0, %s288
    %s292 = sphi 0, %s291
    %s308 = sphi 0, %s292
    %s314 = sphi 0, %s316
    %s317 = sphi 0, %s314
    %s318 = sphi 0, %s317
    %s334 = sphi 0, %s318
    %s340 = sphi 0, %s342
    %s343 = sphi 0, %s340
    %s344 = sphi 0, %s343
    %s360 = sphi 0, %s344
    %s366 = sphi 0, %s368
    %s369 = sphi 0, %s366
    %s370 = sphi 0, %s369
    %s386 = sphi 0, %s370
    %s392 = sphi 0, %s394
    %s395 = sphi 0, %s392
    %s396 = sphi 0, %s395
    %s412 = sphi 0, %s396
    %s418 = sphi 0, %s420
    %s421 = sphi 0, %s418
    %s422 = sphi 0, %s421
    %s438 = sphi 0, %s422
    %s444 = sphi 0, %s446
    %s447 = sphi 0, %s444
    %s448 = sphi 0, %s447
    %s464 = sphi 0, %s448
    %s470 = sphi 0, %s472
    %s473 = sphi 0, %s470
    %s474 = sphi 0, %s473
    %s490 = sphi 0, %s474
    %s494 = sphi 0, %s494
    %s496 = sphi 0, %s494
    %s497 = sphi 0, %s496
    %s511 = sphi 0, %s497
    %s515 = sphi 0, %s515
    %s517 = sphi 0, %s515
    %s518 = sphi 0, %s517
    %s532 = sphi 0, %s518
    %s538 = sphi 0, %s540
    %s541 = sphi 0, %s538
    %s542 = sphi 0, %s541
    %s558 = sphi 0, %s542
  $region4: #{singlestep_pose_forward.1} parent=0 // loop_header_branch
    %29 = sbr.rel (%p27) target = $region8
  $region5: #{singlestep_pose_forward.1} parent=0 // loop_body
    %s31 = ssub.s32 %s26, 1
    %s32 = ssub.s32 %s26, 2
    %s39 = sadd.s32 1, %s34
    %p40 = scmp.ge.s32.totalorder %s39, 2
    %s41 = scalar_select %p40, 0, %s39
    %s42 = sadd.s32 1, %s33
    %s43 = scalar_select %p40, %s42, %s33
    %p44 = scmp.ge.s32.totalorder %s43, 2
    %s45 = scalar_select %p44, 0, %s43
    %s46 = ssub.s32 %s33, %s45
    %p47 = scmp.eq.s32.totalorder %s46, 0
    %s49 = sadd.s32 %s48, 1
    %s50 = scalar_select %p47, %s48, %s49
    %p53 = pneg %p47
    %p54 = scmp.eq.s32.totalorder %s26, 3
    %p55 = por %p53, %p54
    %p56 = scmp.ne.s32.totalorder %s48, %s51
    %p57 = scmp.eq.s32.totalorder %s26, 0
    %p58 = por %p56, %p57
    %p59 = scmp.ne.s32.totalorder %s48, %s51
    %p60 = scmp.eq.s32.totalorder %s31, 3
    %p61 = por %p59, %p60
    %p62 = scmp.ne.s32.totalorder %s51, %s52
    %p63 = scmp.eq.s32.totalorder %s31, 0
    %p64 = por %p62, %p63
    %p65 = scmp.ne.s32.totalorder %s51, %s52
    %p66 = scmp.eq.s32.totalorder %s32, 3
    %p67 = por %p65, %p66
    %p69 = scmp.ne.s32.totalorder %s52, %s68
    %p70 = scmp.eq.s32.totalorder %s32, 0
    %p71 = por %p69, %p70
    %s72 = ssub.s32 %s33, %s45
    %p73 = scmp.eq.s32.totalorder %s72, 0
    %s75 = sadd.s32 %s74, 1
    %s76 = scalar_select %p73, %s74, %s75
    %p79 = pneg %p73
    %p80 = scmp.eq.s32.totalorder %s26, 3
    %p81 = por %p79, %p80
    %p82 = scmp.ne.s32.totalorder %s74, %s77
    %p83 = scmp.eq.s32.totalorder %s26, 0
    %p84 = por %p82, %p83
    %p85 = scmp.ne.s32.totalorder %s74, %s77
    %p86 = scmp.eq.s32.totalorder %s31, 3
    %p87 = por %p85, %p86
    %p88 = scmp.ne.s32.totalorder %s77, %s78
    %p89 = scmp.eq.s32.totalorder %s31, 0
    %p90 = por %p88, %p89
    %p91 = scmp.ne.s32.totalorder %s77, %s78
    %p92 = scmp.eq.s32.totalorder %s32, 3
    %p93 = por %p91, %p92
    %p95 = scmp.ne.s32.totalorder %s78, %s94
    %p96 = scmp.eq.s32.totalorder %s32, 0
    %p97 = por %p95, %p96
    %s99 = sadd.s32 %s98, 1
    %p102 = scmp.eq.s32.totalorder %s26, 3
    %p103 = scmp.ne.s32.totalorder %s98, %s100
    %p104 = scmp.eq.s32.totalorder %s26, 0
    %p105 = por %p103, %p104
    %p106 = scmp.ne.s32.totalorder %s98, %s100
    %p107 = scmp.eq.s32.totalorder %s31, 3
    %p108 = por %p106, %p107
    %p109 = scmp.ne.s32.totalorder %s100, %s101
    %p110 = scmp.eq.s32.totalorder %s31, 0
    %p111 = por %p109, %p110
    %p112 = scmp.ne.s32.totalorder %s100, %s101
    %p113 = scmp.eq.s32.totalorder %s32, 3
    %p114 = por %p112, %p113
    %p116 = scmp.ne.s32.totalorder %s101, %s115
    %p117 = scmp.eq.s32.totalorder %s32, 0
    %p118 = por %p116, %p117
    %s120 = sadd.s32 %s119, 1
    %p123 = scmp.eq.s32.totalorder %s26, 3
    %p124 = scmp.ne.s32.totalorder %s119, %s121
    %p125 = scmp.eq.s32.totalorder %s26, 0
    %p126 = por %p124, %p125
    %p127 = scmp.ne.s32.totalorder %s119, %s121
    %p128 = scmp.eq.s32.totalorder %s31, 3
    %p129 = por %p127, %p128
    %p130 = scmp.ne.s32.totalorder %s121, %s122
    %p131 = scmp.eq.s32.totalorder %s31, 0
    %p132 = por %p130, %p131
    %p133 = scmp.ne.s32.totalorder %s121, %s122
    %p134 = scmp.eq.s32.totalorder %s32, 3
    %p135 = por %p133, %p134
    %p137 = scmp.ne.s32.totalorder %s122, %s136
    %p138 = scmp.eq.s32.totalorder %s32, 0
    %p139 = por %p137, %p138
    %s141 = sadd.s32 %s140, 1
    %p144 = scmp.eq.s32.totalorder %s26, 3
    %p145 = scmp.ne.s32.totalorder %s140, %s142
    %p146 = scmp.eq.s32.totalorder %s26, 0
    %p147 = por %p145, %p146
    %p148 = scmp.ne.s32.totalorder %s140, %s142
    %p149 = scmp.eq.s32.totalorder %s31, 3
    %p150 = por %p148, %p149
    %p151 = scmp.ne.s32.totalorder %s142, %s143
    %p152 = scmp.eq.s32.totalorder %s31, 0
    %p153 = por %p151, %p152
    %p154 = scmp.ne.s32.totalorder %s142, %s143
    %p155 = scmp.eq.s32.totalorder %s32, 3
    %p156 = por %p154, %p155
    %p158 = scmp.ne.s32.totalorder %s143, %s157
    %p159 = scmp.eq.s32.totalorder %s32, 0
    %p160 = por %p158, %p159
    %s162 = sadd.s32 %s161, 1
    %p165 = scmp.eq.s32.totalorder %s26, 3
    %p166 = scmp.ne.s32.totalorder %s161, %s163
    %p167 = scmp.eq.s32.totalorder %s26, 0
    %p168 = por %p166, %p167
    %p169 = scmp.ne.s32.totalorder %s161, %s163
    %p170 = scmp.eq.s32.totalorder %s31, 3
    %p171 = por %p169, %p170
    %p172 = scmp.ne.s32.totalorder %s163, %s164
    %p173 = scmp.eq.s32.totalorder %s31, 0
    %p174 = por %p172, %p173
    %p175 = scmp.ne.s32.totalorder %s163, %s164
    %p176 = scmp.eq.s32.totalorder %s32, 3
    %p177 = por %p175, %p176
    %p179 = scmp.ne.s32.totalorder %s164, %s178
    %p180 = scmp.eq.s32.totalorder %s32, 0
    %p181 = por %p179, %p180
    %s182 = ssub.s32 %s34, %s41
    %p183 = scmp.eq.s32.totalorder %s182, 0
    %s185 = sadd.s32 %s184, 1
    %s186 = scalar_select %p183, %s184, %s185
    %p189 = pneg %p183
    %p190 = scmp.eq.s32.totalorder %s26, 3
    %p191 = por %p189, %p190
    %p192 = scmp.ne.s32.totalorder %s184, %s187
    %p193 = scmp.eq.s32.totalorder %s26, 0
    %p194 = por %p192, %p193
    %p195 = scmp.ne.s32.totalorder %s184, %s187
    %p196 = scmp.eq.s32.totalorder %s31, 3
    %p197 = por %p195, %p196
    %p198 = scmp.ne.s32.totalorder %s187, %s188
    %p199 = scmp.eq.s32.totalorder %s31, 0
    %p200 = por %p198, %p199
    %p201 = scmp.ne.s32.totalorder %s187, %s188
    %p202 = scmp.eq.s32.totalorder %s32, 3
    %p203 = por %p201, %p202
    %p205 = scmp.ne.s32.totalorder %s188, %s204
    %p206 = scmp.eq.s32.totalorder %s32, 0
    %p207 = por %p205, %p206
    %s208 = ssub.s32 %s34, %s41
    %p209 = scmp.eq.s32.totalorder %s208, 0
    %s211 = sadd.s32 %s210, 1
    %s212 = scalar_select %p209, %s210, %s211
    %p215 = pneg %p209
    %p216 = scmp.eq.s32.totalorder %s26, 3
    %p217 = por %p215, %p216
    %p218 = scmp.ne.s32.totalorder %s210, %s213
    %p219 = scmp.eq.s32.totalorder %s26, 0
    %p220 = por %p218, %p219
    %p221 = scmp.ne.s32.totalorder %s210, %s213
    %p222 = scmp.eq.s32.totalorder %s31, 3
    %p223 = por %p221, %p222
    %p224 = scmp.ne.s32.totalorder %s213, %s214
    %p225 = scmp.eq.s32.totalorder %s31, 0
    %p226 = por %p224, %p225
    %p227 = scmp.ne.s32.totalorder %s213, %s214
    %p228 = scmp.eq.s32.totalorder %s32, 3
    %p229 = por %p227, %p228
    %p231 = scmp.ne.s32.totalorder %s214, %s230
    %p232 = scmp.eq.s32.totalorder %s32, 0
    %p233 = por %p231, %p232
    %s234 = ssub.s32 %s34, %s41
    %p235 = scmp.eq.s32.totalorder %s234, 0
    %s237 = sadd.s32 %s236, 1
    %s238 = scalar_select %p235, %s236, %s237
    %p241 = pneg %p235
    %p242 = scmp.eq.s32.totalorder %s26, 3
    %p243 = por %p241, %p242
    %p244 = scmp.ne.s32.totalorder %s236, %s239
    %p245 = scmp.eq.s32.totalorder %s26, 0
    %p246 = por %p244, %p245
    %p247 = scmp.ne.s32.totalorder %s236, %s239
    %p248 = scmp.eq.s32.totalorder %s31, 3
    %p249 = por %p247, %p248
    %p250 = scmp.ne.s32.totalorder %s239, %s240
    %p251 = scmp.eq.s32.totalorder %s31, 0
    %p252 = por %p250, %p251
    %p253 = scmp.ne.s32.totalorder %s239, %s240
    %p254 = scmp.eq.s32.totalorder %s32, 3
    %p255 = por %p253, %p254
    %p257 = scmp.ne.s32.totalorder %s240, %s256
    %p258 = scmp.eq.s32.totalorder %s32, 0
    %p259 = por %p257, %p258
    %s260 = ssub.s32 %s34, %s41
    %p261 = scmp.eq.s32.totalorder %s260, 0
    %s263 = sadd.s32 %s262, 1
    %s264 = scalar_select %p261, %s262, %s263
    %p267 = pneg %p261
    %p268 = scmp.eq.s32.totalorder %s26, 3
    %p269 = por %p267, %p268
    %p270 = scmp.ne.s32.totalorder %s262, %s265
    %p271 = scmp.eq.s32.totalorder %s26, 0
    %p272 = por %p270, %p271
    %p273 = scmp.ne.s32.totalorder %s262, %s265
    %p274 = scmp.eq.s32.totalorder %s31, 3
    %p275 = por %p273, %p274
    %p276 = scmp.ne.s32.totalorder %s265, %s266
    %p277 = scmp.eq.s32.totalorder %s31, 0
    %p278 = por %p276, %p277
    %p279 = scmp.ne.s32.totalorder %s265, %s266
    %p280 = scmp.eq.s32.totalorder %s32, 3
    %p281 = por %p279, %p280
    %p283 = scmp.ne.s32.totalorder %s266, %s282
    %p284 = scmp.eq.s32.totalorder %s32, 0
    %p285 = por %p283, %p284
    %s286 = ssub.s32 %s34, %s41
    %p287 = scmp.eq.s32.totalorder %s286, 0
    %s289 = sadd.s32 %s288, 1
    %s290 = scalar_select %p287, %s288, %s289
    %p293 = pneg %p287
    %p294 = scmp.eq.s32.totalorder %s26, 3
    %p295 = por %p293, %p294
    %p296 = scmp.ne.s32.totalorder %s288, %s291
    %p297 = scmp.eq.s32.totalorder %s26, 0
    %p298 = por %p296, %p297
    %p299 = scmp.ne.s32.totalorder %s288, %s291
    %p300 = scmp.eq.s32.totalorder %s31, 3
    %p301 = por %p299, %p300
    %p302 = scmp.ne.s32.totalorder %s291, %s292
    %p303 = scmp.eq.s32.totalorder %s31, 0
    %p304 = por %p302, %p303
    %p305 = scmp.ne.s32.totalorder %s291, %s292
    %p306 = scmp.eq.s32.totalorder %s32, 3
    %p307 = por %p305, %p306
    %p309 = scmp.ne.s32.totalorder %s292, %s308
    %p310 = scmp.eq.s32.totalorder %s32, 0
    %p311 = por %p309, %p310
    %s312 = ssub.s32 %s34, %s41
    %p313 = scmp.eq.s32.totalorder %s312, 0
    %s315 = sadd.s32 %s314, 1
    %s316 = scalar_select %p313, %s314, %s315
    %p319 = pneg %p313
    %p320 = scmp.eq.s32.totalorder %s26, 3
    %p321 = por %p319, %p320
    %p322 = scmp.ne.s32.totalorder %s314, %s317
    %p323 = scmp.eq.s32.totalorder %s26, 0
    %p324 = por %p322, %p323
    %p325 = scmp.ne.s32.totalorder %s314, %s317
    %p326 = scmp.eq.s32.totalorder %s31, 3
    %p327 = por %p325, %p326
    %p328 = scmp.ne.s32.totalorder %s317, %s318
    %p329 = scmp.eq.s32.totalorder %s31, 0
    %p330 = por %p328, %p329
    %p331 = scmp.ne.s32.totalorder %s317, %s318
    %p332 = scmp.eq.s32.totalorder %s32, 3
    %p333 = por %p331, %p332
    %p335 = scmp.ne.s32.totalorder %s318, %s334
    %p336 = scmp.eq.s32.totalorder %s32, 0
    %p337 = por %p335, %p336
    %s338 = ssub.s32 %s34, %s41
    %p339 = scmp.eq.s32.totalorder %s338, 0
    %s341 = sadd.s32 %s340, 1
    %s342 = scalar_select %p339, %s340, %s341
    %p345 = pneg %p339
    %p346 = scmp.eq.s32.totalorder %s26, 3
    %p347 = por %p345, %p346
    %p348 = scmp.ne.s32.totalorder %s340, %s343
    %p349 = scmp.eq.s32.totalorder %s26, 0
    %p350 = por %p348, %p349
    %p351 = scmp.ne.s32.totalorder %s340, %s343
    %p352 = scmp.eq.s32.totalorder %s31, 3
    %p353 = por %p351, %p352
    %p354 = scmp.ne.s32.totalorder %s343, %s344
    %p355 = scmp.eq.s32.totalorder %s31, 0
    %p356 = por %p354, %p355
    %p357 = scmp.ne.s32.totalorder %s343, %s344
    %p358 = scmp.eq.s32.totalorder %s32, 3
    %p359 = por %p357, %p358
    %p361 = scmp.ne.s32.totalorder %s344, %s360
    %p362 = scmp.eq.s32.totalorder %s32, 0
    %p363 = por %p361, %p362
    %s364 = ssub.s32 %s34, %s41
    %p365 = scmp.eq.s32.totalorder %s364, 0
    %s367 = sadd.s32 %s366, 1
    %s368 = scalar_select %p365, %s366, %s367
    %p371 = pneg %p365
    %p372 = scmp.eq.s32.totalorder %s26, 3
    %p373 = por %p371, %p372
    %p374 = scmp.ne.s32.totalorder %s366, %s369
    %p375 = scmp.eq.s32.totalorder %s26, 0
    %p376 = por %p374, %p375
    %p377 = scmp.ne.s32.totalorder %s366, %s369
    %p378 = scmp.eq.s32.totalorder %s31, 3
    %p379 = por %p377, %p378
    %p380 = scmp.ne.s32.totalorder %s369, %s370
    %p381 = scmp.eq.s32.totalorder %s31, 0
    %p382 = por %p380, %p381
    %p383 = scmp.ne.s32.totalorder %s369, %s370
    %p384 = scmp.eq.s32.totalorder %s32, 3
    %p385 = por %p383, %p384
    %p387 = scmp.ne.s32.totalorder %s370, %s386
    %p388 = scmp.eq.s32.totalorder %s32, 0
    %p389 = por %p387, %p388
    %s390 = ssub.s32 %s34, %s41
    %p391 = scmp.eq.s32.totalorder %s390, 0
    %s393 = sadd.s32 %s392, 1
    %s394 = scalar_select %p391, %s392, %s393
    %p397 = pneg %p391
    %p398 = scmp.eq.s32.totalorder %s26, 3
    %p399 = por %p397, %p398
    %p400 = scmp.ne.s32.totalorder %s392, %s395
    %p401 = scmp.eq.s32.totalorder %s26, 0
    %p402 = por %p400, %p401
    %p403 = scmp.ne.s32.totalorder %s392, %s395
    %p404 = scmp.eq.s32.totalorder %s31, 3
    %p405 = por %p403, %p404
    %p406 = scmp.ne.s32.totalorder %s395, %s396
    %p407 = scmp.eq.s32.totalorder %s31, 0
    %p408 = por %p406, %p407
    %p409 = scmp.ne.s32.totalorder %s395, %s396
    %p410 = scmp.eq.s32.totalorder %s32, 3
    %p411 = por %p409, %p410
    %p413 = scmp.ne.s32.totalorder %s396, %s412
    %p414 = scmp.eq.s32.totalorder %s32, 0
    %p415 = por %p413, %p414
    %s416 = ssub.s32 %s34, %s41
    %p417 = scmp.eq.s32.totalorder %s416, 0
    %s419 = sadd.s32 %s418, 1
    %s420 = scalar_select %p417, %s418, %s419
    %p423 = pneg %p417
    %p424 = scmp.eq.s32.totalorder %s26, 3
    %p425 = por %p423, %p424
    %p426 = scmp.ne.s32.totalorder %s418, %s421
    %p427 = scmp.eq.s32.totalorder %s26, 0
    %p428 = por %p426, %p427
    %p429 = scmp.ne.s32.totalorder %s418, %s421
    %p430 = scmp.eq.s32.totalorder %s31, 3
    %p431 = por %p429, %p430
    %p432 = scmp.ne.s32.totalorder %s421, %s422
    %p433 = scmp.eq.s32.totalorder %s31, 0
    %p434 = por %p432, %p433
    %p435 = scmp.ne.s32.totalorder %s421, %s422
    %p436 = scmp.eq.s32.totalorder %s32, 3
    %p437 = por %p435, %p436
    %p439 = scmp.ne.s32.totalorder %s422, %s438
    %p440 = scmp.eq.s32.totalorder %s32, 0
    %p441 = por %p439, %p440
    %s442 = ssub.s32 %s34, %s41
    %p443 = scmp.eq.s32.totalorder %s442, 0
    %s445 = sadd.s32 %s444, 1
    %s446 = scalar_select %p443, %s444, %s445
    %p449 = pneg %p443
    %p450 = scmp.eq.s32.totalorder %s26, 3
    %p451 = por %p449, %p450
    %p452 = scmp.ne.s32.totalorder %s444, %s447
    %p453 = scmp.eq.s32.totalorder %s26, 0
    %p454 = por %p452, %p453
    %p455 = scmp.ne.s32.totalorder %s444, %s447
    %p456 = scmp.eq.s32.totalorder %s31, 3
    %p457 = por %p455, %p456
    %p458 = scmp.ne.s32.totalorder %s447, %s448
    %p459 = scmp.eq.s32.totalorder %s31, 0
    %p460 = por %p458, %p459
    %p461 = scmp.ne.s32.totalorder %s447, %s448
    %p462 = scmp.eq.s32.totalorder %s32, 3
    %p463 = por %p461, %p462
    %p465 = scmp.ne.s32.totalorder %s448, %s464
    %p466 = scmp.eq.s32.totalorder %s32, 0
    %p467 = por %p465, %p466
    %s468 = ssub.s32 %s34, %s41
    %p469 = scmp.eq.s32.totalorder %s468, 0
    %s471 = sadd.s32 %s470, 1
    %s472 = scalar_select %p469, %s470, %s471
    %p475 = pneg %p469
    %p476 = scmp.eq.s32.totalorder %s26, 3
    %p477 = por %p475, %p476
    %p478 = scmp.ne.s32.totalorder %s470, %s473
    %p479 = scmp.eq.s32.totalorder %s26, 0
    %p480 = por %p478, %p479
    %p481 = scmp.ne.s32.totalorder %s470, %s473
    %p482 = scmp.eq.s32.totalorder %s31, 3
    %p483 = por %p481, %p482
    %p484 = scmp.ne.s32.totalorder %s473, %s474
    %p485 = scmp.eq.s32.totalorder %s31, 0
    %p486 = por %p484, %p485
    %p487 = scmp.ne.s32.totalorder %s473, %s474
    %p488 = scmp.eq.s32.totalorder %s32, 3
    %p489 = por %p487, %p488
    %p491 = scmp.ne.s32.totalorder %s474, %s490
    %p492 = scmp.eq.s32.totalorder %s32, 0
    %p493 = por %p491, %p492
    %s495 = sadd.s32 %s494, 1
    %p498 = scmp.eq.s32.totalorder %s26, 3
    %p499 = scmp.ne.s32.totalorder %s494, %s496
    %p500 = scmp.eq.s32.totalorder %s26, 0
    %p501 = por %p499, %p500
    %p502 = scmp.ne.s32.totalorder %s494, %s496
    %p503 = scmp.eq.s32.totalorder %s31, 3
    %p504 = por %p502, %p503
    %p505 = scmp.ne.s32.totalorder %s496, %s497
    %p506 = scmp.eq.s32.totalorder %s31, 0
    %p507 = por %p505, %p506
    %p508 = scmp.ne.s32.totalorder %s496, %s497
    %p509 = scmp.eq.s32.totalorder %s32, 3
    %p510 = por %p508, %p509
    %p512 = scmp.ne.s32.totalorder %s497, %s511
    %p513 = scmp.eq.s32.totalorder %s32, 0
    %p514 = por %p512, %p513
    %s516 = sadd.s32 %s515, 1
    %p519 = scmp.eq.s32.totalorder %s26, 3
    %p520 = scmp.ne.s32.totalorder %s515, %s517
    %p521 = scmp.eq.s32.totalorder %s26, 0
    %p522 = por %p520, %p521
    %p523 = scmp.ne.s32.totalorder %s515, %s517
    %p524 = scmp.eq.s32.totalorder %s31, 3
    %p525 = por %p523, %p524
    %p526 = scmp.ne.s32.totalorder %s517, %s518
    %p527 = scmp.eq.s32.totalorder %s31, 0
    %p528 = por %p526, %p527
    %p529 = scmp.ne.s32.totalorder %s517, %s518
    %p530 = scmp.eq.s32.totalorder %s32, 3
    %p531 = por %p529, %p530
    %p533 = scmp.ne.s32.totalorder %s518, %s532
    %p534 = scmp.eq.s32.totalorder %s32, 0
    %p535 = por %p533, %p534
    %s536 = ssub.s32 %s33, %s45
    %p537 = scmp.eq.s32.totalorder %s536, 0
    %s539 = sadd.s32 %s538, 1
    %s540 = scalar_select %p537, %s538, %s539
    %p543 = pneg %p537
    %p544 = scmp.eq.s32.totalorder %s26, 3
    %p545 = por %p543, %p544
    %p546 = scmp.ne.s32.totalorder %s538, %s541
    %p547 = scmp.eq.s32.totalorder %s26, 0
    %p548 = por %p546, %p547
    %p549 = scmp.ne.s32.totalorder %s538, %s541
    %p550 = scmp.eq.s32.totalorder %s31, 3
    %p551 = por %p549, %p550
    %p552 = scmp.ne.s32.totalorder %s541, %s542
    %p553 = scmp.eq.s32.totalorder %s31, 0
    %p554 = por %p552, %p553
    %p555 = scmp.ne.s32.totalorder %s541, %s542
    %p556 = scmp.eq.s32.totalorder %s32, 3
    %p557 = por %p555, %p556
    %p559 = scmp.ne.s32.totalorder %s542, %s558
    %p560 = scmp.eq.s32.totalorder %s32, 0
    %p561 = por %p559, %p560
    %p562 = scmp.le.s32.totalorder 1, %s26
    %p563 = scmp.lt.s32.totalorder %s26, 5
    %p564 = pnand %p562, %p563
    %p565 = pneg %p564
    // Predicated region
    $region9: #{singlestep_pose_forward.1} parent=5 // pred_check
      _
    $region10: #{singlestep_pose_forward.1} parent=5 // pred_check_branch
      %567 = sbr.rel (%p564) target = $region12
    $region11: #{singlestep_pose_forward.1} parent=5 // pred_region
      %s568 = ssub.s32 %s26, 1
      // Predicated region
      $region13: #{singlestep_pose_forward.1} parent=11 // pred_check
        %p569 = pneg %p111
      $region14: #{singlestep_pose_forward.1} parent=11 // pred_check_branch
        %571 = sbr.rel (%p569) target = $region16
      $region15: #{singlestep_pose_forward.1} parent=11 // pred_region
        _
      $region16: #{singlestep_pose_forward.1} parent=11 // pred_fallthru
        _
      // Predicated region
      $region17: #{singlestep_pose_forward.1} parent=11 // pred_check
        %p572 = pneg %p132
      $region18: #{singlestep_pose_forward.1} parent=11 // pred_check_branch
        %574 = sbr.rel (%p572) target = $region20
      $region19: #{singlestep_pose_forward.1} parent=11 // pred_region
        _
      $region20: #{singlestep_pose_forward.1} parent=11 // pred_fallthru
        _
      // Predicated region
      $region21: #{singlestep_pose_forward.1} parent=11 // pred_check
        %p575 = pneg %p153
      $region22: #{singlestep_pose_forward.1} parent=11 // pred_check_branch
        %577 = sbr.rel (%p575) target = $region24
      $region23: #{singlestep_pose_forward.1} parent=11 // pred_region
        _
      $region24: #{singlestep_pose_forward.1} parent=11 // pred_fallthru
        _
      // Predicated region
      $region25: #{singlestep_pose_forward.1} parent=11 // pred_check
        %p578 = pneg %p174
      $region26: #{singlestep_pose_forward.1} parent=11 // pred_check_branch
        %580 = sbr.rel (%p578) target = $region28
      $region27: #{singlestep_pose_forward.1} parent=11 // pred_region
        _
      $region28: #{singlestep_pose_forward.1} parent=11 // pred_fallthru
        _
      // Predicated region
      $region29: #{singlestep_pose_forward.1} parent=11 // pred_check
        %p581 = pneg %p507
      $region30: #{singlestep_pose_forward.1} parent=11 // pred_check_branch
        %583 = sbr.rel (%p581) target = $region32
      $region31: #{singlestep_pose_forward.1} parent=11 // pred_region
        _
      $region32: #{singlestep_pose_forward.1} parent=11 // pred_fallthru
        _
      // Predicated region
      $region33: #{singlestep_pose_forward.1} parent=11 // pred_check
        %p584 = pneg %p528
      $region34: #{singlestep_pose_forward.1} parent=11 // pred_check_branch
        %586 = sbr.rel (%p584) target = $region36
      $region35: #{singlestep_pose_forward.1} parent=11 // pred_region
        _
      $region36: #{singlestep_pose_forward.1} parent=11 // pred_fallthru
        _
    $region12: #{singlestep_pose_forward.1} parent=5 // pred_fallthru
      _
    %p587 = scmp.lt.s32.totalorder %s26, 4
    // Predicated region
    $region37: #{singlestep_pose_forward.1} parent=5 // pred_check
      %p588 = pneg %p587
    $region38: #{singlestep_pose_forward.1} parent=5 // pred_check_branch
      %590 = sbr.rel (%p588) target = $region40
    $region39: #{singlestep_pose_forward.1} parent=5 // pred_region
      // Predicated region
      $region41: #{singlestep_pose_forward.1} parent=39 // pred_check
        %p591 = pneg %p58
      $region42: #{singlestep_pose_forward.1} parent=39 // pred_check_branch
        %593 = sbr.rel (%p591) target = $region44
      $region43: #{singlestep_pose_forward.1} parent=39 // pred_region
        %p594 = scmp.lt.s32.totalorder %s33, 1
        %s595 = scalar_select %p594, %s33, 1
        %s596 = smul.addr %s595, 4
        %s597 = scalar_lea.vmem %s0, %s596
      $region44: #{singlestep_pose_forward.1} parent=39 // pred_fallthru
        _
      // Predicated region
      $region45: #{singlestep_pose_forward.1} parent=39 // pred_check
        %p598 = pneg %p84
      $region46: #{singlestep_pose_forward.1} parent=39 // pred_check_branch
        %600 = sbr.rel (%p598) target = $region48
      $region47: #{singlestep_pose_forward.1} parent=39 // pred_region
        %p601 = scmp.lt.s32.totalorder %s33, 1
        %s602 = scalar_select %p601, %s33, 1
        %s603 = scalar_lea.vmem %s1, %s602
      $region48: #{singlestep_pose_forward.1} parent=39 // pred_fallthru
        _
      // Predicated region
      $region49: #{singlestep_pose_forward.1} parent=39 // pred_check
        %p604 = pneg %p194
      $region50: #{singlestep_pose_forward.1} parent=39 // pred_check_branch
        %606 = sbr.rel (%p604) target = $region52
      $region51: #{singlestep_pose_forward.1} parent=39 // pred_region
        %p607 = scmp.lt.s32.totalorder %s34, 1
        %s608 = scalar_select %p607, %s34, 1
        %s609 = scalar_lea.vmem %s6, %s608
      $region52: #{singlestep_pose_forward.1} parent=39 // pred_fallthru
        _
      // Predicated region
      $region53: #{singlestep_pose_forward.1} parent=39 // pred_check
        %p610 = pneg %p220
      $region54: #{singlestep_pose_forward.1} parent=39 // pred_check_branch
        %612 = sbr.rel (%p610) target = $region56
      $region55: #{singlestep_pose_forward.1} parent=39 // pred_region
        %p613 = scmp.lt.s32.totalorder %s34, 1
        %s614 = scalar_select %p613, %s34, 1
        %s615 = scalar_lea.vmem %s7, %s614
      $region56: #{singlestep_pose_forward.1} parent=39 // pred_fallthru
        _
      // Predicated region
      $region57: #{singlestep_pose_forward.1} parent=39 // pred_check
        %p616 = pneg %p246
      $region58: #{singlestep_pose_forward.1} parent=39 // pred_check_branch
        %618 = sbr.rel (%p616) target = $region60
      $region59: #{singlestep_pose_forward.1} parent=39 // pred_region
        %p619 = scmp.lt.s32.totalorder %s34, 1
        %s620 = scalar_select %p619, %s34, 1
        %s621 = smul.addr %s620, 4
        %s622 = smul.addr %s621, 8
        %s623 = scalar_lea.vmem %s8, %s622
      $region60: #{singlestep_pose_forward.1} parent=39 // pred_fallthru
        _
      // Predicated region
      $region61: #{singlestep_pose_forward.1} parent=39 // pred_check
        %p624 = pneg %p272
      $region62: #{singlestep_pose_forward.1} parent=39 // pred_check_branch
        %626 = sbr.rel (%p624) target = $region64
      $region63: #{singlestep_pose_forward.1} parent=39 // pred_region
        %p627 = scmp.lt.s32.totalorder %s34, 1
        %s628 = scalar_select %p627, %s34, 1
        %s629 = scalar_lea.vmem %s9, %s628
      $region64: #{singlestep_pose_forward.1} parent=39 // pred_fallthru
        _
      // Predicated region
      $region65: #{singlestep_pose_forward.1} parent=39 // pred_check
        %p630 = pneg %p298
      $region66: #{singlestep_pose_forward.1} parent=39 // pred_check_branch
        %632 = sbr.rel (%p630) target = $region68
      $region67: #{singlestep_pose_forward.1} parent=39 // pred_region
        %p633 = scmp.lt.s32.totalorder %s34, 1
        %s634 = scalar_select %p633, %s34, 1
        %s635 = smul.addr %s634, 4
        %s636 = smul.addr %s635, 8
        %s637 = scalar_lea.vmem %s10, %s636
      $region68: #{singlestep_pose_forward.1} parent=39 // pred_fallthru
        _
      // Predicated region
      $region69: #{singlestep_pose_forward.1} parent=39 // pred_check
        %p638 = pneg %p324
      $region70: #{singlestep_pose_forward.1} parent=39 // pred_check_branch
        %640 = sbr.rel (%p638) target = $region72
      $region71: #{singlestep_pose_forward.1} parent=39 // pred_region
        %p641 = scmp.lt.s32.totalorder %s34, 1
        %s642 = scalar_select %p641, %s34, 1
        %s643 = scalar_lea.vmem %s11, %s642
      $region72: #{singlestep_pose_forward.1} parent=39 // pred_fallthru
        _
      // Predicated region
      $region73: #{singlestep_pose_forward.1} parent=39 // pred_check
        %p644 = pneg %p350
      $region74: #{singlestep_pose_forward.1} parent=39 // pred_check_branch
        %646 = sbr.rel (%p644) target = $region76
      $region75: #{singlestep_pose_forward.1} parent=39 // pred_region
        %p647 = scmp.lt.s32.totalorder %s34, 1
        %s648 = scalar_select %p647, %s34, 1
        %s649 = scalar_lea.vmem %s12, %s648
      $region76: #{singlestep_pose_forward.1} parent=39 // pred_fallthru
        _
      // Predicated region
      $region77: #{singlestep_pose_forward.1} parent=39 // pred_check
        %p650 = pneg %p376
      $region78: #{singlestep_pose_forward.1} parent=39 // pred_check_branch
        %652 = sbr.rel (%p650) target = $region80
      $region79: #{singlestep_pose_forward.1} parent=39 // pred_region
        %p653 = scmp.lt.s32.totalorder %s34, 1
        %s654 = scalar_select %p653, %s34, 1
        %s655 = scalar_lea.vmem %s13, %s654
      $region80: #{singlestep_pose_forward.1} parent=39 // pred_fallthru
        _
      // Predicated region
      $region81: #{singlestep_pose_forward.1} parent=39 // pred_check
        %p656 = pneg %p402
      $region82: #{singlestep_pose_forward.1} parent=39 // pred_check_branch
        %658 = sbr.rel (%p656) target = $region84
      $region83: #{singlestep_pose_forward.1} parent=39 // pred_region
        %p659 = scmp.lt.s32.totalorder %s34, 1
        %s660 = scalar_select %p659, %s34, 1
        %s661 = smul.addr %s660, 4
        %s662 = smul.addr %s661, 8
        %s663 = scalar_lea.vmem %s14, %s662
      $region84: #{singlestep_pose_forward.1} parent=39 // pred_fallthru
        _
      // Predicated region
      $region85: #{singlestep_pose_forward.1} parent=39 // pred_check
        %p664 = pneg %p428
      $region86: #{singlestep_pose_forward.1} parent=39 // pred_check_branch
        %666 = sbr.rel (%p664) target = $region88
      $region87: #{singlestep_pose_forward.1} parent=39 // pred_region
        %p667 = scmp.lt.s32.totalorder %s34, 1
        %s668 = scalar_select %p667, %s34, 1
        %s669 = scalar_lea.vmem %s15, %s668
      $region88: #{singlestep_pose_forward.1} parent=39 // pred_fallthru
        _
      // Predicated region
      $region89: #{singlestep_pose_forward.1} parent=39 // pred_check
        %p670 = pneg %p454
      $region90: #{singlestep_pose_forward.1} parent=39 // pred_check_branch
        %672 = sbr.rel (%p670) target = $region92
      $region91: #{singlestep_pose_forward.1} parent=39 // pred_region
        %p673 = scmp.lt.s32.totalorder %s34, 1
        %s674 = scalar_select %p673, %s34, 1
        %s675 = smul.addr %s674, 16
        %s676 = smul.addr %s675, 8
        %s677 = scalar_lea.vmem %s16, %s676
      $region92: #{singlestep_pose_forward.1} parent=39 // pred_fallthru
        _
      // Predicated region
      $region93: #{singlestep_pose_forward.1} parent=39 // pred_check
        %p678 = pneg %p480
      $region94: #{singlestep_pose_forward.1} parent=39 // pred_check_branch
        %680 = sbr.rel (%p678) target = $region96
      $region95: #{singlestep_pose_forward.1} parent=39 // pred_region
        %p681 = scmp.lt.s32.totalorder %s34, 1
        %s682 = scalar_select %p681, %s34, 1
        %s683 = scalar_lea.vmem %s17, %s682
      $region96: #{singlestep_pose_forward.1} parent=39 // pred_fallthru
        _
    $region40: #{singlestep_pose_forward.1} parent=5 // pred_fallthru
      _
    %p684 = scmp.le.s32.totalorder 1, %s26
    %p685 = scmp.lt.s32.totalorder %s26, 5
    %p686 = pnand %p684, %p685
    %p687 = pneg %p686
    // Predicated region
    $region97: #{singlestep_pose_forward.1} parent=5 // pred_check
      _
    $region98: #{singlestep_pose_forward.1} parent=5 // pred_check_branch
      %689 = sbr.rel (%p686) target = $region100
    $region99: #{singlestep_pose_forward.1} parent=5 // pred_region
      %s690 = ssub.s32 %s26, 1
      %p691 = scmp.lt.s32.totalorder %s35, 1
      %s692 = scalar_select %p691, %s35, 1
      %s693 = smul.addr %s692, 4
      %s694 = scalar_lea.vmem %s0, %s693
      %p695 = pneg %p64
      %p696 = pneg %p61
      %p697 = scmp.lt.s32.totalorder %s35, 1
      %s698 = scalar_select %p697, %s35, 1
      %s699 = scalar_lea.vmem %s1, %s698
      %p700 = pneg %p90
      %p701 = pneg %p87
      %p702 = pneg %p111
      %p703 = pneg %p108
      %p704 = pneg %p132
      %p705 = pneg %p129
      %p706 = pneg %p153
      %p707 = pneg %p150
      %p708 = pneg %p174
      %p709 = pneg %p171
      %p710 = scmp.lt.s32.totalorder %s36, 1
      %s711 = scalar_select %p710, %s36, 1
      %s712 = scalar_lea.vmem %s6, %s711
      %p713 = pneg %p200
      %p714 = pneg %p197
      %p715 = scmp.lt.s32.totalorder %s36, 1
      %s716 = scalar_select %p715, %s36, 1
      %s717 = scalar_lea.vmem %s7, %s716
      %p718 = pneg %p226
      %p719 = pneg %p223
      %p720 = scmp.lt.s32.totalorder %s36, 1
      %s721 = scalar_select %p720, %s36, 1
      %s722 = smul.addr %s721, 4
      %s723 = smul.addr %s722, 8
      %s724 = scalar_lea.vmem %s8, %s723
      %p725 = pneg %p252
      %p726 = pneg %p249
      %p727 = scmp.lt.s32.totalorder %s36, 1
      %s728 = scalar_select %p727, %s36, 1
      %s729 = scalar_lea.vmem %s9, %s728
      %p730 = pneg %p278
      %p731 = pneg %p275
      %p732 = scmp.lt.s32.totalorder %s36, 1
      %s733 = scalar_select %p732, %s36, 1
      %s734 = smul.addr %s733, 4
      %s735 = smul.addr %s734, 8
      %s736 = scalar_lea.vmem %s10, %s735
      %p737 = pneg %p304
      %p738 = pneg %p301
      %p739 = scmp.lt.s32.totalorder %s36, 1
      %s740 = scalar_select %p739, %s36, 1
      %s741 = scalar_lea.vmem %s11, %s740
      %p742 = pneg %p330
      %p743 = pneg %p327
      %p744 = scmp.lt.s32.totalorder %s36, 1
      %s745 = scalar_select %p744, %s36, 1
      %s746 = scalar_lea.vmem %s12, %s745
      %p747 = pneg %p356
      %p748 = pneg %p353
      %p749 = scmp.lt.s32.totalorder %s36, 1
      %s750 = scalar_select %p749, %s36, 1
      %s751 = scalar_lea.vmem %s13, %s750
      %p752 = pneg %p382
      %p753 = pneg %p379
      %p754 = scmp.lt.s32.totalorder %s36, 1
      %s755 = scalar_select %p754, %s36, 1
      %s756 = smul.addr %s755, 4
      %s757 = smul.addr %s756, 8
      %s758 = scalar_lea.vmem %s14, %s757
      %p759 = pneg %p408
      %p760 = pneg %p405
      %p761 = scmp.lt.s32.totalorder %s36, 1
      %s762 = scalar_select %p761, %s36, 1
      %s763 = scalar_lea.vmem %s15, %s762
      %p764 = pneg %p434
      %p765 = pneg %p431
      %p766 = scmp.lt.s32.totalorder %s36, 1
      %s767 = scalar_select %p766, %s36, 1
      %s768 = smul.addr %s767, 16
      %s769 = smul.addr %s768, 8
      %s770 = scalar_lea.vmem %s16, %s769
      %p771 = pneg %p460
      %p772 = pneg %p457
      %p773 = scmp.lt.s32.totalorder %s36, 1
      %s774 = scalar_select %p773, %s36, 1
      %s775 = scalar_lea.vmem %s17, %s774
      %p776 = pneg %p486
      %p777 = pneg %p483
      %p778 = pneg %p507
      %p779 = pneg %p504
      %p780 = pneg %p528
      %p781 = pneg %p525
      %p782 = pneg %p554
      %p783 = pneg %p551
      %p784 = scmp.lt.s32.totalorder %s35, 1
      %s785 = scalar_select %p784, %s35, 1
      %s786 = smul.addr %s785, 2
      %s787 = smul.addr %s786, 8
      %s788 = scalar_lea.vmem %s20, %s787
      %p789 = scmp.lt.s32.totalorder %s35, 1
      %s790 = scalar_select %p789, %s35, 1
      %s791 = smul.addr %s790, 4
      %s792 = scalar_lea.vmem %s0, %s791
      %p793 = scmp.lt.s32.totalorder %s35, 1
      %s794 = scalar_select %p793, %s35, 1
      %s795 = scalar_lea.vmem %s1, %s794
      %p796 = scmp.lt.s32.totalorder %s36, 1
      %s797 = scalar_select %p796, %s36, 1
      %s798 = scalar_lea.vmem %s6, %s797
      %p799 = scmp.lt.s32.totalorder %s36, 1
      %s800 = scalar_select %p799, %s36, 1
      %s801 = scalar_lea.vmem %s7, %s800
      %p802 = scmp.lt.s32.totalorder %s36, 1
      %s803 = scalar_select %p802, %s36, 1
      %s804 = smul.addr %s803, 4
      %s805 = smul.addr %s804, 8
      %s806 = scalar_lea.vmem %s8, %s805
      %p807 = scmp.lt.s32.totalorder %s36, 1
      %s808 = scalar_select %p807, %s36, 1
      %s809 = scalar_lea.vmem %s9, %s808
      %p810 = scmp.lt.s32.totalorder %s36, 1
      %s811 = scalar_select %p810, %s36, 1
      %s812 = smul.addr %s811, 4
      %s813 = smul.addr %s812, 8
      %s814 = scalar_lea.vmem %s10, %s813
      %p815 = scmp.lt.s32.totalorder %s36, 1
      %s816 = scalar_select %p815, %s36, 1
      %s817 = scalar_lea.vmem %s11, %s816
      %p818 = scmp.lt.s32.totalorder %s36, 1
      %s819 = scalar_select %p818, %s36, 1
      %s820 = scalar_lea.vmem %s12, %s819
      %p821 = scmp.lt.s32.totalorder %s36, 1
      %s822 = scalar_select %p821, %s36, 1
      %s823 = scalar_lea.vmem %s13, %s822
      %p824 = scmp.lt.s32.totalorder %s36, 1
      %s825 = scalar_select %p824, %s36, 1
      %s826 = smul.addr %s825, 4
      %s827 = smul.addr %s826, 8
      %s828 = scalar_lea.vmem %s14, %s827
      %p829 = scmp.lt.s32.totalorder %s36, 1
      %s830 = scalar_select %p829, %s36, 1
      %s831 = scalar_lea.vmem %s15, %s830
      %p832 = scmp.lt.s32.totalorder %s36, 1
      %s833 = scalar_select %p832, %s36, 1
      %s834 = smul.addr %s833, 16
      %s835 = smul.addr %s834, 8
      %s836 = scalar_lea.vmem %s16, %s835
      %p837 = scmp.lt.s32.totalorder %s36, 1
      %s838 = scalar_select %p837, %s36, 1
      %s839 = scalar_lea.vmem %s17, %s838
      %p840 = scmp.lt.s32.totalorder %s35, 1
      %s841 = scalar_select %p840, %s35, 1
      %s842 = smul.addr %s841, 2
      %s843 = smul.addr %s842, 8
      %s844 = scalar_lea.vmem %s20, %s843
      %p845 = scmp.eq.s32.totalorder %s36, 0
      // Predicated region
      $region101: #{singlestep_pose_forward.1} parent=99 // pred_check
        %p846 = pneg %p845
      $region102: #{singlestep_pose_forward.1} parent=99 // pred_check_branch
        %848 = sbr.rel (%p846) target = $region104
      $region103: #{singlestep_pose_forward.1} parent=99 // pred_region
        %v849 = vld [vmem:[%s2] sm:$0xff]
        %v850 = vld [vmem:[%s2 + $0x8] sm:$0x1]
        %v851 = vld [vmem:[%s3] sm:$0x1]
        %v852 = vld [vmem:[%s792] sm:$0xf]
        %v854 = vlaneseq
        %v855 = vshrl.u32 %v854, 7
        %v856 = vsub.s32 0, %v855
        %v857 = vrot.slane %v851, %v856
        %vm859 = vcmask 72704
        %v861 = vsel %vm859, %v852, 0
        %vm863 = vcmask 1040384
        %v865 = vsel %vm863, %v850, 0
        %867 = vmatprep.subr.mxu0 0.0
        %868 = vmatpush1.msra.mxu0 %v849
        %869 = vmatprep.subr.mxu0 0.0
        %870 = vmatpush1.msra.mxu0 %v865
        %871 = vmatprep.subr.mxu0 0.0
        %872 = vmatpush1.msra.mxu0 0.0
        %873 = vmatprep.subr.mxu0 0.0
        %874 = vmatpush1.msra.mxu0 0.0
        %875 = vmatprep.subr.mxu0 0.0
        %876 = vmatpush1.msra.mxu0 0.0
        %877 = vmatprep.subr.mxu0 0.0
        %878 = vmatpush1.msra.mxu0 0.0
        %879 = vmatprep.subr.mxu0 0.0
        %880 = vmatpush1.msra.mxu0 0.0
        %881 = vmatprep.subr.mxu0 0.0
        %882 = vmatpush1.msra.mxu0 0.0
        %883 = vmatprep.subr.mxu0 0.0
        %884 = vmatpush1.msra.mxu0 0.0
        %885 = vmatprep.subr.mxu0 0.0
        %886 = vmatpush1.msra.mxu0 0.0
        %887 = vmatprep.subr.mxu0 0.0
        %888 = vmatpush1.msra.mxu0 0.0
        %889 = vmatprep.subr.mxu0 0.0
        %890 = vmatpush1.msra.mxu0 0.0
        %891 = vmatprep.subr.mxu0 0.0
        %892 = vmatpush1.msra.mxu0 0.0
        %893 = vmatprep.subr.mxu0 0.0
        %894 = vmatpush1.msra.mxu0 0.0
        %895 = vmatprep.subr.mxu0 0.0
        %896 = vmatpush1.msra.mxu0 0.0
        %897 = vmatprep.subr.mxu0 0.0
        %898 = vmatpush1.msra.mxu0 0.0
        %899 = vmatprep.subr.mxu0 0.0
        %900 = vmatpush1.msra.mxu0 0.0
        %901 = vmatprep.subr.mxu0 0.0
        %902 = vmatpush1.msra.mxu0 0.0
        %903 = vmatprep.subr.mxu0 0.0
        %904 = vmatpush1.msra.mxu0 0.0
        %905 = vmatprep.subr.mxu0 0.0
        %906 = vmatpush1.msra.mxu0 0.0
        %907 = vmatprep.subr.mxu0 0.0
        %908 = vmatpush1.msra.mxu0 0.0
        %909 = vmatprep.subr.mxu0 0.0
        %910 = vmatpush1.msra.mxu0 0.0
        %911 = vmatprep.subr.mxu0 0.0
        %912 = vmatpush1.msra.mxu0 0.0
        %913 = vmatprep.subr.mxu0 0.0
        %914 = vmatpush1.msra.mxu0 0.0
        %915 = vmatprep.subr.mxu0 0.0
        %916 = vmatpush1.msra.mxu0 0.0
        %917 = vmatprep.subr.mxu0 0.0
        %918 = vmatpush1.msra.mxu0 0.0
        %919 = vmatprep.subr.mxu0 0.0
        %920 = vmatpush1.msra.mxu0 0.0
        %921 = vmatprep.subr.mxu0 0.0
        %922 = vmatpush1.msra.mxu0 0.0
        %923 = vmatprep.subr.mxu0 0.0
        %924 = vmatpush1.msra.mxu0 0.0
        %925 = vmatprep.subr.mxu0 0.0
        %926 = vmatpush1.msra.mxu0 0.0
        %927 = vmatprep.subr.mxu0 0.0
        %928 = vmatpush1.msra.mxu0 0.0
        %929 = vmatprep.subr.mxu0 0.0
        %930 = vmatpush1.msra.mxu0 0.0
        %931 = vmatprep.mubr.f32.mxu0 0.0
        %932 = vmatmul.mubr.f32.gmra.mrb[0].mxu0 %v861
        %v933 = vpop.f32.mrb[0].mxu0
        %v934 = vadd.f32 %v857, %v933
        %v935 = vpop.f32.mrb[0].mxu0
        %936 = vdwg.mxu0
        %v937 = vld [vmem:[%s795] sm:$0x1]
        %v939 = vsel %vm859, %v937, 0
        %941 = vmatprep.subr.mxu0 0.0
        %942 = vmatpush1.msra.mxu0 %v849
        %943 = vmatprep.subr.mxu0 0.0
        %944 = vmatpush1.msra.mxu0 %v865
        %945 = vmatprep.subr.mxu0 0.0
        %946 = vmatpush1.msra.mxu0 0.0
        %947 = vmatprep.subr.mxu0 0.0
        %948 = vmatpush1.msra.mxu0 0.0
        %949 = vmatprep.subr.mxu0 0.0
        %950 = vmatpush1.msra.mxu0 0.0
        %951 = vmatprep.subr.mxu0 0.0
        %952 = vmatpush1.msra.mxu0 0.0
        %953 = vmatprep.subr.mxu0 0.0
        %954 = vmatpush1.msra.mxu0 0.0
        %955 = vmatprep.subr.mxu0 0.0
        %956 = vmatpush1.msra.mxu0 0.0
        %957 = vmatprep.subr.mxu0 0.0
        %958 = vmatpush1.msra.mxu0 0.0
        %959 = vmatprep.subr.mxu0 0.0
        %960 = vmatpush1.msra.mxu0 0.0
        %961 = vmatprep.subr.mxu0 0.0
        %962 = vmatpush1.msra.mxu0 0.0
        %963 = vmatprep.subr.mxu0 0.0
        %964 = vmatpush1.msra.mxu0 0.0
        %965 = vmatprep.subr.mxu0 0.0
        %966 = vmatpush1.msra.mxu0 0.0
        %967 = vmatprep.subr.mxu0 0.0
        %968 = vmatpush1.msra.mxu0 0.0
        %969 = vmatprep.subr.mxu0 0.0
        %970 = vmatpush1.msra.mxu0 0.0
        %971 = vmatprep.subr.mxu0 0.0
        %972 = vmatpush1.msra.mxu0 0.0
        %973 = vmatprep.subr.mxu0 0.0
        %974 = vmatpush1.msra.mxu0 0.0
        %975 = vmatprep.subr.mxu0 0.0
        %976 = vmatpush1.msra.mxu0 0.0
        %977 = vmatprep.subr.mxu0 0.0
        %978 = vmatpush1.msra.mxu0 0.0
        %979 = vmatprep.subr.mxu0 0.0
        %980 = vmatpush1.msra.mxu0 0.0
        %981 = vmatprep.subr.mxu0 0.0
        %982 = vmatpush1.msra.mxu0 0.0
        %983 = vmatprep.subr.mxu0 0.0
        %984 = vmatpush1.msra.mxu0 0.0
        %985 = vmatprep.subr.mxu0 0.0
        %986 = vmatpush1.msra.mxu0 0.0
        %987 = vmatprep.subr.mxu0 0.0
        %988 = vmatpush1.msra.mxu0 0.0
        %989 = vmatprep.subr.mxu0 0.0
        %990 = vmatpush1.msra.mxu0 0.0
        %991 = vmatprep.subr.mxu0 0.0
        %992 = vmatpush1.msra.mxu0 0.0
        %993 = vmatprep.subr.mxu0 0.0
        %994 = vmatpush1.msra.mxu0 0.0
        %995 = vmatprep.subr.mxu0 0.0
        %996 = vmatpush1.msra.mxu0 0.0
        %997 = vmatprep.subr.mxu0 0.0
        %998 = vmatpush1.msra.mxu0 0.0
        %999 = vmatprep.subr.mxu0 0.0
        %1000 = vmatpush1.msra.mxu0 0.0
        %1001 = vmatprep.subr.mxu0 0.0
        %1002 = vmatpush1.msra.mxu0 0.0
        %1003 = vmatprep.subr.mxu0 0.0
        %1004 = vmatpush1.msra.mxu0 0.0
        %1005 = vmatprep.mubr.f32.mxu0 0.0
        %1006 = vmatmul.mubr.f32.gmra.mrb[0].mxu0 %v939
        %v1007 = vpop.f32.mrb[0].mxu0
        %v1008 = vadd.f32 %v851, %v1007
        %v1009 = vpop.f32.mrb[0].mxu0
        %1010 = vdwg.mxu0
        %v1011 = vld [vmem:[%s4] sm:$0xf]
        %vm1012 = vcmask 257024
        %1013 = vst.msk [vmem:[#allocation2] sm:$0xf] %vm1012, %v1011
        %v1014 = vld [vmem:[%s4 + $0x4] sm:$0xf]
        %v1015 = vadd.f32 %v934, %v1014
        %1016 = vst.msk [vmem:[#allocation2 + $0x4] sm:$0xf] %vm1012, %v1015
        %v1017 = vld [vmem:[%s4 + $0x8] sm:$0x1]
        %v1018 = vadd.f32 %v1008, %v1017
        %vm1019 = vcmask 253952
        %1020 = vst.msk [vmem:[#allocation2 + $0x8] sm:$0x1] %vm1019, %v1018
      $region104: #{singlestep_pose_forward.1} parent=99 // pred_fallthru
        _
      %v1021 = vld [vmem:[#allocation2] sm:$0xff]
      %v1022 = vld [vmem:[#allocation2 + $0x8] sm:$0x1]
      %v1023 = vld [vmem:[%s5] sm:$0xff]
      %v1024 = vld [vmem:[%s5 + $0x8] sm:$0x1]
      %v1025 = vld [vmem:[%s798] sm:$0x1]
      %v1026 = vld [vmem:[%s801] sm:$0x1]
      %vm1027 = vcmask 261120
      %v1028 = vsel %vm1027, %v1021, 0.0
      %1029 = vadd.xlane.f32.xlu0 %v1028
      %v1030 = vpop.xlane.xlu0 %1029
      %vm1031 = vcmask 253952
      %v1032 = vsel %vm1031, %v1022, 0.0
      %1033 = vadd.xlane.f32.xlu0 %v1032
      %v1034 = vpop.xlane.xlu0 %1033
      %v1035 = vrcp.pop 32.0
      %v1036 = vmul.f32 %v1030, %v1035
      %v1037 = vmul.f32 %v1034, %v1035
      %v1038 = vsub.f32 %v1021, %v1036
      %v1039 = vsub.f32 %v1022, %v1037
      %v1040 = vmul.f32 %v1038, %v1038
      %v1041 = vmul.f32 %v1039, %v1039
      %v1042 = vsel %vm1027, %v1040, 0.0
      %1043 = vadd.xlane.f32.xlu0 %v1042
      %v1044 = vpop.xlane.xlu0 %1043
      %v1045 = vsel %vm1031, %v1041, 0.0
      %1046 = vadd.xlane.f32.xlu0 %v1045
      %v1047 = vpop.xlane.xlu0 %1046
      %v1048 = vmul.f32 %v1044, %v1035
      %v1049 = vmul.f32 %v1047, %v1035
      %v1050 = vadd.f32 %v1048, 1e-05
      %v1051 = vadd.f32 %v1049, 1e-05
      %v1052 = vrsqrt.pop %v1050
      %v1053 = vrsqrt.pop %v1051
      %v1054 = vmul.f32 %v1038, %v1052
      %v1055 = vmul.f32 %v1039, %v1053
      %v1057 = vlaneseq
      %v1058 = vshrl.u32 %v1057, 7
      %v1059 = vsub.s32 0, %v1058
      %v1060 = vrot.slane %v1025, %v1059
      %v1062 = vmul.f32 %v1054, %v1060
      %v1063 = vmul.f32 %v1055, %v1060
      %v1065 = vlaneseq
      %v1066 = vshrl.u32 %v1065, 7
      %v1067 = vsub.s32 0, %v1066
      %v1068 = vrot.slane %v1026, %v1067
      %v1070 = vadd.f32 %v1062, %v1068
      %v1071 = vadd.f32 %v1063, %v1068
      %v1072 = vld [vmem:[%s806] sm:$0xff]
      %v1073 = vld [vmem:[%s806 + $0x8] sm:$0xff]
      %v1074 = vld [vmem:[%s806 + $0x10] sm:$0xff]
      %v1075 = vld [vmem:[%s806 + $0x18] sm:$0xff]
      %v1076 = vld [vmem:[%s809] sm:$0x1]
      %v1078 = vlaneseq
      %v1079 = vshrl.u32 %v1078, 7
      %v1080 = vsub.s32 0, %v1079
      %v1081 = vrot.slane %v1076, %v1080
      %v1084 = vsel %vm1027, %v1070, 0
      %v1087 = vsel %vm1027, %v1071, 0
      %1089 = vmatprep.subr.mxu0 0.0
      %1090 = vmatpush1.msra.mxu0 %v1072
      %1091 = vmatprep.subr.mxu0 0.0
      %1092 = vmatpush1.msra.mxu0 %v1073
      %1093 = vmatprep.subr.mxu0 0.0
      %1094 = vmatpush1.msra.mxu0 %v1074
      %1095 = vmatprep.subr.mxu0 0.0
      %1096 = vmatpush1.msra.mxu0 %v1075
      %1097 = vmatprep.subr.mxu0 0.0
      %1098 = vmatpush1.msra.mxu0 0.0
      %1099 = vmatprep.subr.mxu0 0.0
      %1100 = vmatpush1.msra.mxu0 0.0
      %1101 = vmatprep.subr.mxu0 0.0
      %1102 = vmatpush1.msra.mxu0 0.0
      %1103 = vmatprep.subr.mxu0 0.0
      %1104 = vmatpush1.msra.mxu0 0.0
      %1105 = vmatprep.subr.mxu0 0.0
      %1106 = vmatpush1.msra.mxu0 0.0
      %1107 = vmatprep.subr.mxu0 0.0
      %1108 = vmatpush1.msra.mxu0 0.0
      %1109 = vmatprep.subr.mxu0 0.0
      %1110 = vmatpush1.msra.mxu0 0.0
      %1111 = vmatprep.subr.mxu0 0.0
      %1112 = vmatpush1.msra.mxu0 0.0
      %1113 = vmatprep.subr.mxu0 0.0
      %1114 = vmatpush1.msra.mxu0 0.0
      %1115 = vmatprep.subr.mxu0 0.0
      %1116 = vmatpush1.msra.mxu0 0.0
      %1117 = vmatprep.subr.mxu0 0.0
      %1118 = vmatpush1.msra.mxu0 0.0
      %1119 = vmatprep.subr.mxu0 0.0
      %1120 = vmatpush1.msra.mxu0 0.0
      %1121 = vmatprep.subr.mxu0 0.0
      %1122 = vmatpush1.msra.mxu0 0.0
      %1123 = vmatprep.subr.mxu0 0.0
      %1124 = vmatpush1.msra.mxu0 0.0
      %1125 = vmatprep.subr.mxu0 0.0
      %1126 = vmatpush1.msra.mxu0 0.0
      %1127 = vmatprep.subr.mxu0 0.0
      %1128 = vmatpush1.msra.mxu0 0.0
      %1129 = vmatprep.subr.mxu0 0.0
      %1130 = vmatpush1.msra.mxu0 0.0
      %1131 = vmatprep.subr.mxu0 0.0
      %1132 = vmatpush1.msra.mxu0 0.0
      %1133 = vmatprep.subr.mxu0 0.0
      %1134 = vmatpush1.msra.mxu0 0.0
      %1135 = vmatprep.subr.mxu0 0.0
      %1136 = vmatpush1.msra.mxu0 0.0
      %1137 = vmatprep.subr.mxu0 0.0
      %1138 = vmatpush1.msra.mxu0 0.0
      %1139 = vmatprep.subr.mxu0 0.0
      %1140 = vmatpush1.msra.mxu0 0.0
      %1141 = vmatprep.subr.mxu0 0.0
      %1142 = vmatpush1.msra.mxu0 0.0
      %1143 = vmatprep.subr.mxu0 0.0
      %1144 = vmatpush1.msra.mxu0 0.0
      %1145 = vmatprep.subr.mxu0 0.0
      %1146 = vmatpush1.msra.mxu0 0.0
      %1147 = vmatprep.subr.mxu0 0.0
      %1148 = vmatpush1.msra.mxu0 0.0
      %1149 = vmatprep.subr.mxu0 0.0
      %1150 = vmatpush1.msra.mxu0 0.0
      %1151 = vmatprep.subr.mxu0 0.0
      %1152 = vmatpush1.msra.mxu0 0.0
      %1153 = vmatprep.mubr.f32.mxu0 0.0
      %1154 = vmatmul.mubr.f32.gmra.mrb[0].mxu0 %v1084
      %v1155 = vpop.f32.mrb[0].mxu0
      %v1156 = vadd.f32 %v1081, %v1155
      %v1157 = vpop.f32.mrb[0].mxu0
      %1158 = vmatprep.mubr.f32.mxu0 0.0
      %1159 = vmatmul.mubr.f32.gmra.mrb[0].mxu0 %v1087
      %v1160 = vpop.f32.mrb[0].mxu0
      %v1161 = vadd.f32 %v1081, %v1160
      %v1162 = vpop.f32.mrb[0].mxu0
      %1163 = vdwg.mxu0
      %1166 = vrot.lane.b32.xlu0 %v1156, 96
      %v1167 = vpop.permute.xlu0 %1166
      %1168 = vrot.lane.b32.xlu0 %v1161, 96
      %v1169 = vpop.permute.xlu0 %1168
      %vm1170 = vcmask 64512
      %v1171 = vsel %vm1170, %v1156, 0
      %v1173 = vsel %vm1170, %v1161, 0
      %v1175 = vsel %vm1170, %v1167, 0
      %v1177 = vsel %vm1170, %v1169, 0
      %1179 = vmatprep.subr.mxu0 0.0
      %1180 = vmatpush1.xpose.msra.mxu0 %v1175
      %1181 = vmatprep.subr.mxu0 0.0
      %1182 = vmatpush1.xpose.msra.mxu0 %v1177
      %1183 = vmatprep.subr.mxu0 0.0
      %1184 = vmatpush1.xpose.msra.mxu0 0.0
      %1185 = vmatprep.subr.mxu0 0.0
      %1186 = vmatpush1.xpose.msra.mxu0 0.0
      %1187 = vmatprep.subr.mxu0 0.0
      %1188 = vmatpush1.xpose.msra.mxu0 0.0
      %1189 = vmatprep.subr.mxu0 0.0
      %1190 = vmatpush1.xpose.msra.mxu0 0.0
      %1191 = vmatprep.subr.mxu0 0.0
      %1192 = vmatpush1.xpose.msra.mxu0 0.0
      %1193 = vmatprep.subr.mxu0 0.0
      %1194 = vmatpush1.xpose.msra.mxu0 0.0
      %1195 = vmatprep.subr.mxu0 0.0
      %1196 = vmatpush1.xpose.msra.mxu0 0.0
      %1197 = vmatprep.subr.mxu0 0.0
      %1198 = vmatpush1.xpose.msra.mxu0 0.0
      %1199 = vmatprep.subr.mxu0 0.0
      %1200 = vmatpush1.xpose.msra.mxu0 0.0
      %1201 = vmatprep.subr.mxu0 0.0
      %1202 = vmatpush1.xpose.msra.mxu0 0.0
      %1203 = vmatprep.subr.mxu0 0.0
      %1204 = vmatpush1.xpose.msra.mxu0 0.0
      %1205 = vmatprep.subr.mxu0 0.0
      %1206 = vmatpush1.xpose.msra.mxu0 0.0
      %1207 = vmatprep.subr.mxu0 0.0
      %1208 = vmatpush1.xpose.msra.mxu0 0.0
      %1209 = vmatprep.subr.mxu0 0.0
      %1210 = vmatpush1.xpose.msra.mxu0 0.0
      %1211 = vmatprep.subr.mxu0 0.0
      %1212 = vmatpush1.xpose.msra.mxu0 0.0
      %1213 = vmatprep.subr.mxu0 0.0
      %1214 = vmatpush1.xpose.msra.mxu0 0.0
      %1215 = vmatprep.subr.mxu0 0.0
      %1216 = vmatpush1.xpose.msra.mxu0 0.0
      %1217 = vmatprep.subr.mxu0 0.0
      %1218 = vmatpush1.xpose.msra.mxu0 0.0
      %1219 = vmatprep.subr.mxu0 0.0
      %1220 = vmatpush1.xpose.msra.mxu0 0.0
      %1221 = vmatprep.subr.mxu0 0.0
      %1222 = vmatpush1.xpose.msra.mxu0 0.0
      %1223 = vmatprep.subr.mxu0 0.0
      %1224 = vmatpush1.xpose.msra.mxu0 0.0
      %1225 = vmatprep.subr.mxu0 0.0
      %1226 = vmatpush1.xpose.msra.mxu0 0.0
      %1227 = vmatprep.subr.mxu0 0.0
      %1228 = vmatpush1.xpose.msra.mxu0 0.0
      %1229 = vmatprep.subr.mxu0 0.0
      %1230 = vmatpush1.xpose.msra.mxu0 0.0
      %1231 = vmatprep.subr.mxu0 0.0
      %1232 = vmatpush1.xpose.msra.mxu0 0.0
      %1233 = vmatprep.subr.mxu0 0.0
      %1234 = vmatpush1.xpose.msra.mxu0 0.0
      %1235 = vmatprep.subr.mxu0 0.0
      %1236 = vmatpush1.xpose.msra.mxu0 0.0
      %1237 = vmatprep.subr.mxu0 0.0
      %1238 = vmatpush1.xpose.msra.mxu0 0.0
      %1239 = vmatprep.subr.mxu0 0.0
      %1240 = vmatpush1.xpose.msra.mxu0 0.0
      %1241 = vmatprep.subr.mxu0 0.0
      %1242 = vmatpush1.xpose.msra.mxu0 0.0
      %1243 = vmatprep.mubr.f32.mxu0 0.0
      %1244 = vmatmul.mubr.f32.gmra.mrb[0].mxu0 %v1171
      %v1245 = vpop.f32.mrb[0].mxu0
      %v1246 = vadd.f32 0.0, %v1245
      %v1247 = vpop.f32.mrb[0].mxu0
      %1248 = vmatprep.mubr.f32.mxu0 0.0
      %1249 = vmatmul.mubr.f32.gmra.mrb[0].mxu0 %v1173
      %v1250 = vpop.f32.mrb[0].mxu0
      %v1251 = vadd.f32 0.0, %v1250
      %v1252 = vpop.f32.mrb[0].mxu0
      %1253 = vdwg.mxu0
      %v1254 = vmul.f32 %v1246, 0.35355338
      %v1255 = vmul.f32 %v1251, 0.35355338
      %v1256 = vadd.f32 %v1254, %v1023
      %v1257 = vadd.f32 %v1255, %v1024
      %1258 = vrot.lane.b32.xlu0 %v1156, 120
      %v1259 = vpop.permute.xlu0 %1258
      %1260 = vrot.lane.b32.xlu0 %v1161, 120
      %v1261 = vpop.permute.xlu0 %1260
      %1262 = vrot.lane.b32.xlu0 %v1156, 88
      %v1263 = vpop.permute.xlu0 %1262
      %1264 = vrot.lane.b32.xlu0 %v1161, 88
      %v1265 = vpop.permute.xlu0 %1264
      %v1266 = vsel %vm1170, %v1259, 0
      %v1268 = vsel %vm1170, %v1261, 0
      %v1270 = vsel %vm1170, %v1263, 0
      %v1272 = vsel %vm1170, %v1265, 0
      %1274 = vmatprep.subr.mxu0 0.0
      %1275 = vmatpush1.xpose.msra.mxu0 %v1270
      %1276 = vmatprep.subr.mxu0 0.0
      %1277 = vmatpush1.xpose.msra.mxu0 %v1272
      %1278 = vmatprep.subr.mxu0 0.0
      %1279 = vmatpush1.xpose.msra.mxu0 0.0
      %1280 = vmatprep.subr.mxu0 0.0
      %1281 = vmatpush1.xpose.msra.mxu0 0.0
      %1282 = vmatprep.subr.mxu0 0.0
      %1283 = vmatpush1.xpose.msra.mxu0 0.0
      %1284 = vmatprep.subr.mxu0 0.0
      %1285 = vmatpush1.xpose.msra.mxu0 0.0
      %1286 = vmatprep.subr.mxu0 0.0
      %1287 = vmatpush1.xpose.msra.mxu0 0.0
      %1288 = vmatprep.subr.mxu0 0.0
      %1289 = vmatpush1.xpose.msra.mxu0 0.0
      %1290 = vmatprep.subr.mxu0 0.0
      %1291 = vmatpush1.xpose.msra.mxu0 0.0
      %1292 = vmatprep.subr.mxu0 0.0
      %1293 = vmatpush1.xpose.msra.mxu0 0.0
      %1294 = vmatprep.subr.mxu0 0.0
      %1295 = vmatpush1.xpose.msra.mxu0 0.0
      %1296 = vmatprep.subr.mxu0 0.0
      %1297 = vmatpush1.xpose.msra.mxu0 0.0
      %1298 = vmatprep.subr.mxu0 0.0
      %1299 = vmatpush1.xpose.msra.mxu0 0.0
      %1300 = vmatprep.subr.mxu0 0.0
      %1301 = vmatpush1.xpose.msra.mxu0 0.0
      %1302 = vmatprep.subr.mxu0 0.0
      %1303 = vmatpush1.xpose.msra.mxu0 0.0
      %1304 = vmatprep.subr.mxu0 0.0
      %1305 = vmatpush1.xpose.msra.mxu0 0.0
      %1306 = vmatprep.subr.mxu0 0.0
      %1307 = vmatpush1.xpose.msra.mxu0 0.0
      %1308 = vmatprep.subr.mxu0 0.0
      %1309 = vmatpush1.xpose.msra.mxu0 0.0
      %1310 = vmatprep.subr.mxu0 0.0
      %1311 = vmatpush1.xpose.msra.mxu0 0.0
      %1312 = vmatprep.subr.mxu0 0.0
      %1313 = vmatpush1.xpose.msra.mxu0 0.0
      %1314 = vmatprep.subr.mxu0 0.0
      %1315 = vmatpush1.xpose.msra.mxu0 0.0
      %1316 = vmatprep.subr.mxu0 0.0
      %1317 = vmatpush1.xpose.msra.mxu0 0.0
      %1318 = vmatprep.subr.mxu0 0.0
      %1319 = vmatpush1.xpose.msra.mxu0 0.0
      %1320 = vmatprep.subr.mxu0 0.0
      %1321 = vmatpush1.xpose.msra.mxu0 0.0
      %1322 = vmatprep.subr.mxu0 0.0
      %1323 = vmatpush1.xpose.msra.mxu0 0.0
      %1324 = vmatprep.subr.mxu0 0.0
      %1325 = vmatpush1.xpose.msra.mxu0 0.0
      %1326 = vmatprep.subr.mxu0 0.0
      %1327 = vmatpush1.xpose.msra.mxu0 0.0
      %1328 = vmatprep.subr.mxu0 0.0
      %1329 = vmatpush1.xpose.msra.mxu0 0.0
      %1330 = vmatprep.subr.mxu0 0.0
      %1331 = vmatpush1.xpose.msra.mxu0 0.0
      %1332 = vmatprep.subr.mxu0 0.0
      %1333 = vmatpush1.xpose.msra.mxu0 0.0
      %1334 = vmatprep.subr.mxu0 0.0
      %1335 = vmatpush1.xpose.msra.mxu0 0.0
      %1336 = vmatprep.subr.mxu0 0.0
      %1337 = vmatpush1.xpose.msra.mxu0 0.0
      %1338 = vmatprep.mubr.f32.mxu0 0.0
      %1339 = vmatmul.mubr.f32.gmra.mrb[0].mxu0 %v1266
      %v1340 = vpop.f32.mrb[0].mxu0
      %v1341 = vadd.f32 0.0, %v1340
      %v1342 = vpop.f32.mrb[0].mxu0
      %1343 = vmatprep.mubr.f32.mxu0 0.0
      %1344 = vmatmul.mubr.f32.gmra.mrb[0].mxu0 %v1268
      %v1345 = vpop.f32.mrb[0].mxu0
      %v1346 = vadd.f32 0.0, %v1345
      %v1347 = vpop.f32.mrb[0].mxu0
      %1348 = vdwg.mxu0
      %v1349 = vmul.f32 %v1341, 0.35355338
      %v1350 = vmul.f32 %v1346, 0.35355338
      %v1351 = vadd.f32 %v1349, %v1023
      %v1352 = vadd.f32 %v1350, %v1024
      %1353 = vrot.lane.b32.xlu0 %v1156, 112
      %v1354 = vpop.permute.xlu0 %1353
      %1355 = vrot.lane.b32.xlu0 %v1161, 112
      %v1356 = vpop.permute.xlu0 %1355
      %1357 = vrot.lane.b32.xlu0 %v1156, 80
      %v1358 = vpop.permute.xlu0 %1357
      %1359 = vrot.lane.b32.xlu0 %v1161, 80
      %v1360 = vpop.permute.xlu0 %1359
      %v1361 = vsel %vm1170, %v1354, 0
      %v1363 = vsel %vm1170, %v1356, 0
      %v1365 = vsel %vm1170, %v1358, 0
      %v1367 = vsel %vm1170, %v1360, 0
      %1369 = vmatprep.subr.mxu0 0.0
      %1370 = vmatpush1.xpose.msra.mxu0 %v1365
      %1371 = vmatprep.subr.mxu0 0.0
      %1372 = vmatpush1.xpose.msra.mxu0 %v1367
      %1373 = vmatprep.subr.mxu0 0.0
      %1374 = vmatpush1.xpose.msra.mxu0 0.0
      %1375 = vmatprep.subr.mxu0 0.0
      %1376 = vmatpush1.xpose.msra.mxu0 0.0
      %1377 = vmatprep.subr.mxu0 0.0
      %1378 = vmatpush1.xpose.msra.mxu0 0.0
      %1379 = vmatprep.subr.mxu0 0.0
      %1380 = vmatpush1.xpose.msra.mxu0 0.0
      %1381 = vmatprep.subr.mxu0 0.0
      %1382 = vmatpush1.xpose.msra.mxu0 0.0
      %1383 = vmatprep.subr.mxu0 0.0
      %1384 = vmatpush1.xpose.msra.mxu0 0.0
      %1385 = vmatprep.subr.mxu0 0.0
      %1386 = vmatpush1.xpose.msra.mxu0 0.0
      %1387 = vmatprep.subr.mxu0 0.0
      %1388 = vmatpush1.xpose.msra.mxu0 0.0
      %1389 = vmatprep.subr.mxu0 0.0
      %1390 = vmatpush1.xpose.msra.mxu0 0.0
      %1391 = vmatprep.subr.mxu0 0.0
      %1392 = vmatpush1.xpose.msra.mxu0 0.0
      %1393 = vmatprep.subr.mxu0 0.0
      %1394 = vmatpush1.xpose.msra.mxu0 0.0
      %1395 = vmatprep.subr.mxu0 0.0
      %1396 = vmatpush1.xpose.msra.mxu0 0.0
      %1397 = vmatprep.subr.mxu0 0.0
      %1398 = vmatpush1.xpose.msra.mxu0 0.0
      %1399 = vmatprep.subr.mxu0 0.0
      %1400 = vmatpush1.xpose.msra.mxu0 0.0
      %1401 = vmatprep.subr.mxu0 0.0
      %1402 = vmatpush1.xpose.msra.mxu0 0.0
      %1403 = vmatprep.subr.mxu0 0.0
      %1404 = vmatpush1.xpose.msra.mxu0 0.0
      %1405 = vmatprep.subr.mxu0 0.0
      %1406 = vmatpush1.xpose.msra.mxu0 0.0
      %1407 = vmatprep.subr.mxu0 0.0
      %1408 = vmatpush1.xpose.msra.mxu0 0.0
      %1409 = vmatprep.subr.mxu0 0.0
      %1410 = vmatpush1.xpose.msra.mxu0 0.0
      %1411 = vmatprep.subr.mxu0 0.0
      %1412 = vmatpush1.xpose.msra.mxu0 0.0
      %1413 = vmatprep.subr.mxu0 0.0
      %1414 = vmatpush1.xpose.msra.mxu0 0.0
      %1415 = vmatprep.subr.mxu0 0.0
      %1416 = vmatpush1.xpose.msra.mxu0 0.0
      %1417 = vmatprep.subr.mxu0 0.0
      %1418 = vmatpush1.xpose.msra.mxu0 0.0
      %1419 = vmatprep.subr.mxu0 0.0
      %1420 = vmatpush1.xpose.msra.mxu0 0.0
      %1421 = vmatprep.subr.mxu0 0.0
      %1422 = vmatpush1.xpose.msra.mxu0 0.0
      %1423 = vmatprep.subr.mxu0 0.0
      %1424 = vmatpush1.xpose.msra.mxu0 0.0
      %1425 = vmatprep.subr.mxu0 0.0
      %1426 = vmatpush1.xpose.msra.mxu0 0.0
      %1427 = vmatprep.subr.mxu0 0.0
      %1428 = vmatpush1.xpose.msra.mxu0 0.0
      %1429 = vmatprep.subr.mxu0 0.0
      %1430 = vmatpush1.xpose.msra.mxu0 0.0
      %1431 = vmatprep.subr.mxu0 0.0
      %1432 = vmatpush1.xpose.msra.mxu0 0.0
      %1433 = vmatprep.mubr.f32.mxu0 0.0
      %1434 = vmatmul.mubr.f32.gmra.mrb[0].mxu0 %v1361
      %v1435 = vpop.f32.mrb[0].mxu0
      %v1436 = vadd.f32 0.0, %v1435
      %v1437 = vpop.f32.mrb[0].mxu0
      %1438 = vmatprep.mubr.f32.mxu0 0.0
      %1439 = vmatmul.mubr.f32.gmra.mrb[0].mxu0 %v1363
      %v1440 = vpop.f32.mrb[0].mxu0
      %v1441 = vadd.f32 0.0, %v1440
      %v1442 = vpop.f32.mrb[0].mxu0
      %1443 = vdwg.mxu0
      %v1444 = vmul.f32 %v1436, 0.35355338
      %v1445 = vmul.f32 %v1441, 0.35355338
      %v1446 = vadd.f32 %v1444, %v1023
      %v1447 = vadd.f32 %v1445, %v1024
      %1448 = vrot.lane.b32.xlu0 %v1156, 104
      %v1449 = vpop.permute.xlu0 %1448
      %1450 = vrot.lane.b32.xlu0 %v1161, 104
      %v1451 = vpop.permute.xlu0 %1450
      %1452 = vrot.lane.b32.xlu0 %v1156, 72
      %v1453 = vpop.permute.xlu0 %1452
      %1454 = vrot.lane.b32.xlu0 %v1161, 72
      %v1455 = vpop.permute.xlu0 %1454
      %v1456 = vsel %vm1170, %v1449, 0
      %v1458 = vsel %vm1170, %v1451, 0
      %v1460 = vsel %vm1170, %v1453, 0
      %v1462 = vsel %vm1170, %v1455, 0
      %1464 = vmatprep.subr.mxu0 0.0
      %1465 = vmatpush1.xpose.msra.mxu0 %v1460
      %1466 = vmatprep.subr.mxu0 0.0
      %1467 = vmatpush1.xpose.msra.mxu0 %v1462
      %1468 = vmatprep.subr.mxu0 0.0
      %1469 = vmatpush1.xpose.msra.mxu0 0.0
      %1470 = vmatprep.subr.mxu0 0.0
      %1471 = vmatpush1.xpose.msra.mxu0 0.0
      %1472 = vmatprep.subr.mxu0 0.0
      %1473 = vmatpush1.xpose.msra.mxu0 0.0
      %1474 = vmatprep.subr.mxu0 0.0
      %1475 = vmatpush1.xpose.msra.mxu0 0.0
      %1476 = vmatprep.subr.mxu0 0.0
      %1477 = vmatpush1.xpose.msra.mxu0 0.0
      %1478 = vmatprep.subr.mxu0 0.0
      %1479 = vmatpush1.xpose.msra.mxu0 0.0
      %1480 = vmatprep.subr.mxu0 0.0
      %1481 = vmatpush1.xpose.msra.mxu0 0.0
      %1482 = vmatprep.subr.mxu0 0.0
      %1483 = vmatpush1.xpose.msra.mxu0 0.0
      %1484 = vmatprep.subr.mxu0 0.0
      %1485 = vmatpush1.xpose.msra.mxu0 0.0
      %1486 = vmatprep.subr.mxu0 0.0
      %1487 = vmatpush1.xpose.msra.mxu0 0.0
      %1488 = vmatprep.subr.mxu0 0.0
      %1489 = vmatpush1.xpose.msra.mxu0 0.0
      %1490 = vmatprep.subr.mxu0 0.0
      %1491 = vmatpush1.xpose.msra.mxu0 0.0
      %1492 = vmatprep.subr.mxu0 0.0
      %1493 = vmatpush1.xpose.msra.mxu0 0.0
      %1494 = vmatprep.subr.mxu0 0.0
      %1495 = vmatpush1.xpose.msra.mxu0 0.0
      %1496 = vmatprep.subr.mxu0 0.0
      %1497 = vmatpush1.xpose.msra.mxu0 0.0
      %1498 = vmatprep.subr.mxu0 0.0
      %1499 = vmatpush1.xpose.msra.mxu0 0.0
      %1500 = vmatprep.subr.mxu0 0.0
      %1501 = vmatpush1.xpose.msra.mxu0 0.0
      %1502 = vmatprep.subr.mxu0 0.0
      %1503 = vmatpush1.xpose.msra.mxu0 0.0
      %1504 = vmatprep.subr.mxu0 0.0
      %1505 = vmatpush1.xpose.msra.mxu0 0.0
      %1506 = vmatprep.subr.mxu0 0.0
      %1507 = vmatpush1.xpose.msra.mxu0 0.0
      %1508 = vmatprep.subr.mxu0 0.0
      %1509 = vmatpush1.xpose.msra.mxu0 0.0
      %1510 = vmatprep.subr.mxu0 0.0
      %1511 = vmatpush1.xpose.msra.mxu0 0.0
      %1512 = vmatprep.subr.mxu0 0.0
      %1513 = vmatpush1.xpose.msra.mxu0 0.0
      %1514 = vmatprep.subr.mxu0 0.0
      %1515 = vmatpush1.xpose.msra.mxu0 0.0
      %1516 = vmatprep.subr.mxu0 0.0
      %1517 = vmatpush1.xpose.msra.mxu0 0.0
      %1518 = vmatprep.subr.mxu0 0.0
      %1519 = vmatpush1.xpose.msra.mxu0 0.0
      %1520 = vmatprep.subr.mxu0 0.0
      %1521 = vmatpush1.xpose.msra.mxu0 0.0
      %1522 = vmatprep.subr.mxu0 0.0
      %1523 = vmatpush1.xpose.msra.mxu0 0.0
      %1524 = vmatprep.subr.mxu0 0.0
      %1525 = vmatpush1.xpose.msra.mxu0 0.0
      %1526 = vmatprep.subr.mxu0 0.0
      %1527 = vmatpush1.xpose.msra.mxu0 0.0
      %1528 = vmatprep.mubr.f32.mxu0 0.0
      %1529 = vmatmul.mubr.f32.gmra.mrb[0].mxu0 %v1456
      %v1530 = vpop.f32.mrb[0].mxu0
      %v1531 = vadd.f32 0.0, %v1530
      %v1532 = vpop.f32.mrb[0].mxu0
      %1533 = vmatprep.mubr.f32.mxu0 0.0
      %1534 = vmatmul.mubr.f32.gmra.mrb[0].mxu0 %v1458
      %v1535 = vpop.f32.mrb[0].mxu0
      %v1536 = vadd.f32 0.0, %v1535
      %v1537 = vpop.f32.mrb[0].mxu0
      %1538 = vdwg.mxu0
      %v1539 = vmul.f32 %v1531, 0.35355338
      %v1540 = vmul.f32 %v1536, 0.35355338
      %v1541 = vadd.f32 %v1539, %v1023
      %v1542 = vadd.f32 %v1540, %v1024
      %vm1545 = vcmask 1040384
      %v1546 = vrot.slane %v1351, 7
      %v1547 = vrot.slane %v1352, 7
      %v1548 = vsel %vm1545, %v1546, %v1547
      %vm1553 = vcmask 1041408
      %v1554 = vrot.slane %v1446, 6
      %v1555 = vrot.slane %v1447, 6
      %v1556 = vsel %vm1553, %v1554, %v1555
      %vm1561 = vcmask 1042432
      %v1562 = vrot.slane %v1541, 5
      %v1563 = vrot.slane %v1542, 5
      %v1564 = vsel %vm1561, %v1562, %v1563
      %v1567 = vsel %vm1545, %v1257, %v1546
      %v1568 = vsel %vm1553, %v1548, %v1554
      %v1569 = vsel %vm1561, %v1556, %v1562
      %vm1570 = vcmask 72704
      %v1571 = vsel %vm1570, %v1256, -inf
      %1572 = vmax.xlane.f32.xlu0 %v1571
      %v1573 = vpop.xlane.xlu0 %1572
      %v1574 = vsel %vm1570, %v1567, -inf
      %1575 = vmax.xlane.f32.xlu0 %v1574
      %v1576 = vpop.xlane.xlu0 %1575
      %v1577 = vsel %vm1570, %v1568, -inf
      %1578 = vmax.xlane.f32.xlu0 %v1577
      %v1579 = vpop.xlane.xlu0 %1578
      %v1580 = vsel %vm1570, %v1569, -inf
      %1581 = vmax.xlane.f32.xlu0 %v1580
      %v1582 = vpop.xlane.xlu0 %1581
      %vm1583 = vcmask 68608
      %v1584 = vsel %vm1583, %v1564, -inf
      %1585 = vmax.xlane.f32.xlu0 %v1584
      %v1586 = vpop.xlane.xlu0 %1585
      %v1587 = vsub.f32 %v1256, %v1573
      %v1588 = vsub.f32 %v1567, %v1576
      %v1589 = vsub.f32 %v1568, %v1579
      %v1590 = vsub.f32 %v1569, %v1582
      %v1591 = vsub.f32 %v1564, %v1586
      %v1592 = vmul.f32 %v1587, 1.442695
      %v1593 = vpow.pop %v1592
      %v1594 = vmul.f32 %v1588, 1.442695
      %v1595 = vpow.pop %v1594
      %v1596 = vmul.f32 %v1589, 1.442695
      %v1597 = vpow.pop %v1596
      %v1598 = vmul.f32 %v1590, 1.442695
      %v1599 = vpow.pop %v1598
      %v1600 = vmul.f32 %v1591, 1.442695
      %v1601 = vpow.pop %v1600
      %v1602 = vsel %vm1570, %v1593, 0.0
      %1603 = vadd.xlane.f32.xlu0 %v1602
      %v1604 = vpop.xlane.xlu0 %1603
      %v1605 = vsel %vm1570, %v1595, 0.0
      %1606 = vadd.xlane.f32.xlu0 %v1605
      %v1607 = vpop.xlane.xlu0 %1606
      %v1608 = vsel %vm1570, %v1597, 0.0
      %1609 = vadd.xlane.f32.xlu0 %v1608
      %v1610 = vpop.xlane.xlu0 %1609
      %v1611 = vsel %vm1570, %v1599, 0.0
      %1612 = vadd.xlane.f32.xlu0 %v1611
      %v1613 = vpop.xlane.xlu0 %1612
      %v1614 = vsel %vm1583, %v1601, 0.0
      %1615 = vadd.xlane.f32.xlu0 %v1614
      %v1616 = vpop.xlane.xlu0 %1615
      %v1617 = vrcp.pop %v1604
      %v1618 = vmul.f32 %v1593, %v1617
      %v1619 = vrcp.pop %v1607
      %v1620 = vmul.f32 %v1595, %v1619
      %v1621 = vrcp.pop %v1610
      %v1622 = vmul.f32 %v1597, %v1621
      %v1623 = vrcp.pop %v1613
      %v1624 = vmul.f32 %v1599, %v1623
      %v1625 = vrcp.pop %v1616
      %v1626 = vmul.f32 %v1601, %v1625
      %1627 = vrot.lane.b32.xlu0 %v1156, 64
      %v1628 = vpop.permute.xlu0 %1627
      %1629 = vrot.lane.b32.xlu0 %v1161, 64
      %v1630 = vpop.permute.xlu0 %1629
      %v1633 = vsel %vm1570, %v1618, 0
      %v1636 = vsel %vm1570, %v1620, 0
      %v1638 = vsel %vm1545, %v1630, 0
      %1640 = vmatprep.subr.mxu0 0.0
      %1641 = vmatpush1.msra.mxu0 %v1628
      %1642 = vmatprep.subr.mxu0 0.0
      %1643 = vmatpush1.msra.mxu0 %v1638
      %1644 = vmatprep.subr.mxu0 0.0
      %1645 = vmatpush1.msra.mxu0 0.0
      %1646 = vmatprep.subr.mxu0 0.0
      %1647 = vmatpush1.msra.mxu0 0.0
      %1648 = vmatprep.subr.mxu0 0.0
      %1649 = vmatpush1.msra.mxu0 0.0
      %1650 = vmatprep.subr.mxu0 0.0
      %1651 = vmatpush1.msra.mxu0 0.0
      %1652 = vmatprep.subr.mxu0 0.0
      %1653 = vmatpush1.msra.mxu0 0.0
      %1654 = vmatprep.subr.mxu0 0.0
      %1655 = vmatpush1.msra.mxu0 0.0
      %1656 = vmatprep.subr.mxu0 0.0
      %1657 = vmatpush1.msra.mxu0 0.0
      %1658 = vmatprep.subr.mxu0 0.0
      %1659 = vmatpush1.msra.mxu0 0.0
      %1660 = vmatprep.subr.mxu0 0.0
      %1661 = vmatpush1.msra.mxu0 0.0
      %1662 = vmatprep.subr.mxu0 0.0
      %1663 = vmatpush1.msra.mxu0 0.0
      %1664 = vmatprep.subr.mxu0 0.0
      %1665 = vmatpush1.msra.mxu0 0.0
      %1666 = vmatprep.subr.mxu0 0.0
      %1667 = vmatpush1.msra.mxu0 0.0
      %1668 = vmatprep.subr.mxu0 0.0
      %1669 = vmatpush1.msra.mxu0 0.0
      %1670 = vmatprep.subr.mxu0 0.0
      %1671 = vmatpush1.msra.mxu0 0.0
      %1672 = vmatprep.subr.mxu0 0.0
      %1673 = vmatpush1.msra.mxu0 0.0
      %1674 = vmatprep.subr.mxu0 0.0
      %1675 = vmatpush1.msra.mxu0 0.0
      %1676 = vmatprep.subr.mxu0 0.0
      %1677 = vmatpush1.msra.mxu0 0.0
      %1678 = vmatprep.subr.mxu0 0.0
      %1679 = vmatpush1.msra.mxu0 0.0
      %1680 = vmatprep.subr.mxu0 0.0
      %1681 = vmatpush1.msra.mxu0 0.0
      %1682 = vmatprep.subr.mxu0 0.0
      %1683 = vmatpush1.msra.mxu0 0.0
      %1684 = vmatprep.subr.mxu0 0.0
      %1685 = vmatpush1.msra.mxu0 0.0
      %1686 = vmatprep.subr.mxu0 0.0
      %1687 = vmatpush1.msra.mxu0 0.0
      %1688 = vmatprep.subr.mxu0 0.0
      %1689 = vmatpush1.msra.mxu0 0.0
      %1690 = vmatprep.subr.mxu0 0.0
      %1691 = vmatpush1.msra.mxu0 0.0
      %1692 = vmatprep.subr.mxu0 0.0
      %1693 = vmatpush1.msra.mxu0 0.0
      %1694 = vmatprep.subr.mxu0 0.0
      %1695 = vmatpush1.msra.mxu0 0.0
      %1696 = vmatprep.subr.mxu0 0.0
      %1697 = vmatpush1.msra.mxu0 0.0
      %1698 = vmatprep.subr.mxu0 0.0
      %1699 = vmatpush1.msra.mxu0 0.0
      %1700 = vmatprep.subr.mxu0 0.0
      %1701 = vmatpush1.msra.mxu0 0.0
      %1702 = vmatprep.subr.mxu0 0.0
      %1703 = vmatpush1.msra.mxu0 0.0
      %1704 = vmatprep.mubr.f32.mxu0 0.0
      %1705 = vmatmul.mubr.f32.gmra.mrb[0].mxu0 %v1633
      %v1706 = vpop.f32.mrb[0].mxu0
      %v1707 = vadd.f32 0.0, %v1706
      %v1708 = vpop.f32.mrb[0].mxu0
      %1709 = vmatprep.mubr.f32.mxu0 0.0
      %1710 = vmatmul.mubr.f32.gmra.mrb[0].mxu0 %v1636
      %v1711 = vpop.f32.mrb[0].mxu0
      %v1712 = vadd.f32 0.0, %v1711
      %v1713 = vpop.f32.mrb[0].mxu0
      %1714 = vdwg.mxu0
      %vm1716 = vcmask 1046528
      %v1717 = vrot.slane %v1620, 1
      %v1718 = vrot.slane %v1622, 1
      %v1719 = vsel %vm1716, %v1717, %v1718
      %1720 = vrot.lane.b32.xlu0 %v1156, 56
      %v1721 = vpop.permute.xlu0 %1720
      %1722 = vrot.lane.b32.xlu0 %v1161, 56
      %v1723 = vpop.permute.xlu0 %1722
      %v1725 = vsel %vm1570, %v1719, 0
      %v1727 = vsel %vm1570, %v1718, 0
      %v1729 = vsel %vm1545, %v1723, 0
      %1731 = vmatprep.subr.mxu0 0.0
      %1732 = vmatpush1.msra.mxu0 %v1721
      %1733 = vmatprep.subr.mxu0 0.0
      %1734 = vmatpush1.msra.mxu0 %v1729
      %1735 = vmatprep.subr.mxu0 0.0
      %1736 = vmatpush1.msra.mxu0 0.0
      %1737 = vmatprep.subr.mxu0 0.0
      %1738 = vmatpush1.msra.mxu0 0.0
      %1739 = vmatprep.subr.mxu0 0.0
      %1740 = vmatpush1.msra.mxu0 0.0
      %1741 = vmatprep.subr.mxu0 0.0
      %1742 = vmatpush1.msra.mxu0 0.0
      %1743 = vmatprep.subr.mxu0 0.0
      %1744 = vmatpush1.msra.mxu0 0.0
      %1745 = vmatprep.subr.mxu0 0.0
      %1746 = vmatpush1.msra.mxu0 0.0
      %1747 = vmatprep.subr.mxu0 0.0
      %1748 = vmatpush1.msra.mxu0 0.0
      %1749 = vmatprep.subr.mxu0 0.0
      %1750 = vmatpush1.msra.mxu0 0.0
      %1751 = vmatprep.subr.mxu0 0.0
      %1752 = vmatpush1.msra.mxu0 0.0
      %1753 = vmatprep.subr.mxu0 0.0
      %1754 = vmatpush1.msra.mxu0 0.0
      %1755 = vmatprep.subr.mxu0 0.0
      %1756 = vmatpush1.msra.mxu0 0.0
      %1757 = vmatprep.subr.mxu0 0.0
      %1758 = vmatpush1.msra.mxu0 0.0
      %1759 = vmatprep.subr.mxu0 0.0
      %1760 = vmatpush1.msra.mxu0 0.0
      %1761 = vmatprep.subr.mxu0 0.0
      %1762 = vmatpush1.msra.mxu0 0.0
      %1763 = vmatprep.subr.mxu0 0.0
      %1764 = vmatpush1.msra.mxu0 0.0
      %1765 = vmatprep.subr.mxu0 0.0
      %1766 = vmatpush1.msra.mxu0 0.0
      %1767 = vmatprep.subr.mxu0 0.0
      %1768 = vmatpush1.msra.mxu0 0.0
      %1769 = vmatprep.subr.mxu0 0.0
      %1770 = vmatpush1.msra.mxu0 0.0
      %1771 = vmatprep.subr.mxu0 0.0
      %1772 = vmatpush1.msra.mxu0 0.0
      %1773 = vmatprep.subr.mxu0 0.0
      %1774 = vmatpush1.msra.mxu0 0.0
      %1775 = vmatprep.subr.mxu0 0.0
      %1776 = vmatpush1.msra.mxu0 0.0
      %1777 = vmatprep.subr.mxu0 0.0
      %1778 = vmatpush1.msra.mxu0 0.0
      %1779 = vmatprep.subr.mxu0 0.0
      %1780 = vmatpush1.msra.mxu0 0.0
      %1781 = vmatprep.subr.mxu0 0.0
      %1782 = vmatpush1.msra.mxu0 0.0
      %1783 = vmatprep.subr.mxu0 0.0
      %1784 = vmatpush1.msra.mxu0 0.0
      %1785 = vmatprep.subr.mxu0 0.0
      %1786 = vmatpush1.msra.mxu0 0.0
      %1787 = vmatprep.subr.mxu0 0.0
      %1788 = vmatpush1.msra.mxu0 0.0
      %1789 = vmatprep.subr.mxu0 0.0
      %1790 = vmatpush1.msra.mxu0 0.0
      %1791 = vmatprep.subr.mxu0 0.0
      %1792 = vmatpush1.msra.mxu0 0.0
      %1793 = vmatprep.subr.mxu0 0.0
      %1794 = vmatpush1.msra.mxu0 0.0
      %1795 = vmatprep.mubr.f32.mxu0 0.0
      %1796 = vmatmul.mubr.f32.gmra.mrb[0].mxu0 %v1725
      %v1797 = vpop.f32.mrb[0].mxu0
      %v1798 = vadd.f32 0.0, %v1797
      %v1799 = vpop.f32.mrb[0].mxu0
      %1800 = vmatprep.mubr.f32.mxu0 0.0
      %1801 = vmatmul.mubr.f32.gmra.mrb[0].mxu0 %v1727
      %v1802 = vpop.f32.mrb[0].mxu0
      %v1803 = vadd.f32 0.0, %v1802
      %v1804 = vpop.f32.mrb[0].mxu0
      %1805 = vdwg.mxu0
      %vm1807 = vcmask 1045504
      %v1808 = vrot.slane %v1622, 2
      %v1809 = vrot.slane %v1624, 2
      %v1810 = vsel %vm1807, %v1808, %v1809
      %1811 = vrot.lane.b32.xlu0 %v1156, 48
      %v1812 = vpop.permute.xlu0 %1811
      %1813 = vrot.lane.b32.xlu0 %v1161, 48
      %v1814 = vpop.permute.xlu0 %1813
      %v1816 = vsel %vm1570, %v1810, 0
      %v1818 = vsel %vm1570, %v1809, 0
      %v1820 = vsel %vm1545, %v1814, 0
      %1822 = vmatprep.subr.mxu0 0.0
      %1823 = vmatpush1.msra.mxu0 %v1812
      %1824 = vmatprep.subr.mxu0 0.0
      %1825 = vmatpush1.msra.mxu0 %v1820
      %1826 = vmatprep.subr.mxu0 0.0
      %1827 = vmatpush1.msra.mxu0 0.0
      %1828 = vmatprep.subr.mxu0 0.0
      %1829 = vmatpush1.msra.mxu0 0.0
      %1830 = vmatprep.subr.mxu0 0.0
      %1831 = vmatpush1.msra.mxu0 0.0
      %1832 = vmatprep.subr.mxu0 0.0
      %1833 = vmatpush1.msra.mxu0 0.0
      %1834 = vmatprep.subr.mxu0 0.0
      %1835 = vmatpush1.msra.mxu0 0.0
      %1836 = vmatprep.subr.mxu0 0.0
      %1837 = vmatpush1.msra.mxu0 0.0
      %1838 = vmatprep.subr.mxu0 0.0
      %1839 = vmatpush1.msra.mxu0 0.0
      %1840 = vmatprep.subr.mxu0 0.0
      %1841 = vmatpush1.msra.mxu0 0.0
      %1842 = vmatprep.subr.mxu0 0.0
      %1843 = vmatpush1.msra.mxu0 0.0
      %1844 = vmatprep.subr.mxu0 0.0
      %1845 = vmatpush1.msra.mxu0 0.0
      %1846 = vmatprep.subr.mxu0 0.0
      %1847 = vmatpush1.msra.mxu0 0.0
      %1848 = vmatprep.subr.mxu0 0.0
      %1849 = vmatpush1.msra.mxu0 0.0
      %1850 = vmatprep.subr.mxu0 0.0
      %1851 = vmatpush1.msra.mxu0 0.0
      %1852 = vmatprep.subr.mxu0 0.0
      %1853 = vmatpush1.msra.mxu0 0.0
      %1854 = vmatprep.subr.mxu0 0.0
      %1855 = vmatpush1.msra.mxu0 0.0
      %1856 = vmatprep.subr.mxu0 0.0
      %1857 = vmatpush1.msra.mxu0 0.0
      %1858 = vmatprep.subr.mxu0 0.0
      %1859 = vmatpush1.msra.mxu0 0.0
      %1860 = vmatprep.subr.mxu0 0.0
      %1861 = vmatpush1.msra.mxu0 0.0
      %1862 = vmatprep.subr.mxu0 0.0
      %1863 = vmatpush1.msra.mxu0 0.0
      %1864 = vmatprep.subr.mxu0 0.0
      %1865 = vmatpush1.msra.mxu0 0.0
      %1866 = vmatprep.subr.mxu0 0.0
      %1867 = vmatpush1.msra.mxu0 0.0
      %1868 = vmatprep.subr.mxu0 0.0
      %1869 = vmatpush1.msra.mxu0 0.0
      %1870 = vmatprep.subr.mxu0 0.0
      %1871 = vmatpush1.msra.mxu0 0.0
      %1872 = vmatprep.subr.mxu0 0.0
      %1873 = vmatpush1.msra.mxu0 0.0
      %1874 = vmatprep.subr.mxu0 0.0
      %1875 = vmatpush1.msra.mxu0 0.0
      %1876 = vmatprep.subr.mxu0 0.0
      %1877 = vmatpush1.msra.mxu0 0.0
      %1878 = vmatprep.subr.mxu0 0.0
      %1879 = vmatpush1.msra.mxu0 0.0
      %1880 = vmatprep.subr.mxu0 0.0
      %1881 = vmatpush1.msra.mxu0 0.0
      %1882 = vmatprep.subr.mxu0 0.0
      %1883 = vmatpush1.msra.mxu0 0.0
      %1884 = vmatprep.subr.mxu0 0.0
      %1885 = vmatpush1.msra.mxu0 0.0
      %1886 = vmatprep.mubr.f32.mxu0 0.0
      %1887 = vmatmul.mubr.f32.gmra.mrb[0].mxu0 %v1816
      %v1888 = vpop.f32.mrb[0].mxu0
      %v1889 = vadd.f32 0.0, %v1888
      %v1890 = vpop.f32.mrb[0].mxu0
      %1891 = vmatprep.mubr.f32.mxu0 0.0
      %1892 = vmatmul.mubr.f32.gmra.mrb[0].mxu0 %v1818
      %v1893 = vpop.f32.mrb[0].mxu0
      %v1894 = vadd.f32 0.0, %v1893
      %v1895 = vpop.f32.mrb[0].mxu0
      %1896 = vdwg.mxu0
      %vm1898 = vcmask 1044480
      %v1899 = vrot.slane %v1624, 3
      %v1900 = vrot.slane %v1626, 3
      %v1901 = vsel %vm1898, %v1899, %v1900
      %1902 = vrot.lane.b32.xlu0 %v1156, 40
      %v1903 = vpop.permute.xlu0 %1902
      %1904 = vrot.lane.b32.xlu0 %v1161, 40
      %v1905 = vpop.permute.xlu0 %1904
      %v1907 = vsel %vm1570, %v1901, 0
      %v1909 = vsel %vm1570, %v1900, 0
      %v1911 = vsel %vm1545, %v1905, 0
      %1913 = vmatprep.subr.mxu0 0.0
      %1914 = vmatpush1.msra.mxu0 %v1903
      %1915 = vmatprep.subr.mxu0 0.0
      %1916 = vmatpush1.msra.mxu0 %v1911
      %1917 = vmatprep.subr.mxu0 0.0
      %1918 = vmatpush1.msra.mxu0 0.0
      %1919 = vmatprep.subr.mxu0 0.0
      %1920 = vmatpush1.msra.mxu0 0.0
      %1921 = vmatprep.subr.mxu0 0.0
      %1922 = vmatpush1.msra.mxu0 0.0
      %1923 = vmatprep.subr.mxu0 0.0
      %1924 = vmatpush1.msra.mxu0 0.0
      %1925 = vmatprep.subr.mxu0 0.0
      %1926 = vmatpush1.msra.mxu0 0.0
      %1927 = vmatprep.subr.mxu0 0.0
      %1928 = vmatpush1.msra.mxu0 0.0
      %1929 = vmatprep.subr.mxu0 0.0
      %1930 = vmatpush1.msra.mxu0 0.0
      %1931 = vmatprep.subr.mxu0 0.0
      %1932 = vmatpush1.msra.mxu0 0.0
      %1933 = vmatprep.subr.mxu0 0.0
      %1934 = vmatpush1.msra.mxu0 0.0
      %1935 = vmatprep.subr.mxu0 0.0
      %1936 = vmatpush1.msra.mxu0 0.0
      %1937 = vmatprep.subr.mxu0 0.0
      %1938 = vmatpush1.msra.mxu0 0.0
      %1939 = vmatprep.subr.mxu0 0.0
      %1940 = vmatpush1.msra.mxu0 0.0
      %1941 = vmatprep.subr.mxu0 0.0
      %1942 = vmatpush1.msra.mxu0 0.0
      %1943 = vmatprep.subr.mxu0 0.0
      %1944 = vmatpush1.msra.mxu0 0.0
      %1945 = vmatprep.subr.mxu0 0.0
      %1946 = vmatpush1.msra.mxu0 0.0
      %1947 = vmatprep.subr.mxu0 0.0
      %1948 = vmatpush1.msra.mxu0 0.0
      %1949 = vmatprep.subr.mxu0 0.0
      %1950 = vmatpush1.msra.mxu0 0.0
      %1951 = vmatprep.subr.mxu0 0.0
      %1952 = vmatpush1.msra.mxu0 0.0
      %1953 = vmatprep.subr.mxu0 0.0
      %1954 = vmatpush1.msra.mxu0 0.0
      %1955 = vmatprep.subr.mxu0 0.0
      %1956 = vmatpush1.msra.mxu0 0.0
      %1957 = vmatprep.subr.mxu0 0.0
      %1958 = vmatpush1.msra.mxu0 0.0
      %1959 = vmatprep.subr.mxu0 0.0
      %1960 = vmatpush1.msra.mxu0 0.0
      %1961 = vmatprep.subr.mxu0 0.0
      %1962 = vmatpush1.msra.mxu0 0.0
      %1963 = vmatprep.subr.mxu0 0.0
      %1964 = vmatpush1.msra.mxu0 0.0
      %1965 = vmatprep.subr.mxu0 0.0
      %1966 = vmatpush1.msra.mxu0 0.0
      %1967 = vmatprep.subr.mxu0 0.0
      %1968 = vmatpush1.msra.mxu0 0.0
      %1969 = vmatprep.subr.mxu0 0.0
      %1970 = vmatpush1.msra.mxu0 0.0
      %1971 = vmatprep.subr.mxu0 0.0
      %1972 = vmatpush1.msra.mxu0 0.0
      %1973 = vmatprep.subr.mxu0 0.0
      %1974 = vmatpush1.msra.mxu0 0.0
      %1975 = vmatprep.subr.mxu0 0.0
      %1976 = vmatpush1.msra.mxu0 0.0
      %1977 = vmatprep.mubr.f32.mxu0 0.0
      %1978 = vmatmul.mubr.f32.gmra.mrb[0].mxu0 %v1907
      %v1979 = vpop.f32.mrb[0].mxu0
      %v1980 = vadd.f32 0.0, %v1979
      %v1981 = vpop.f32.mrb[0].mxu0
      %1982 = vmatprep.mubr.f32.mxu0 0.0
      %1983 = vmatmul.mubr.f32.gmra.mrb[0].mxu0 %v1909
      %v1984 = vpop.f32.mrb[0].mxu0
      %v1985 = vadd.f32 0.0, %v1984
      %v1986 = vpop.f32.mrb[0].mxu0
      %1987 = vdwg.mxu0
      %1990 = vrot.lane.b32.xlu0 %v1798, 8
      %v1991 = vpop.permute.xlu0 %1990
      %1992 = vrot.lane.b32.xlu0 %v1803, 8
      %v1993 = vpop.permute.xlu0 %1992
      %1998 = vrot.lane.b32.xlu0 %v1889, 16
      %v1999 = vpop.permute.xlu0 %1998
      %2000 = vrot.lane.b32.xlu0 %v1894, 16
      %v2001 = vpop.permute.xlu0 %2000
      %2006 = vrot.lane.b32.xlu0 %v1980, 24
      %v2007 = vpop.permute.xlu0 %2006
      %2008 = vrot.lane.b32.xlu0 %v1985, 24
      %v2009 = vpop.permute.xlu0 %2008
      %v2012 = vsel %vm1170, %v1707, %v1991
      %v2013 = vsel %vm1170, %v1712, %v1993
      %vm2014 = vcmask 130048
      %v2015 = vsel %vm2014, %v2012, %v1999
      %v2016 = vsel %vm2014, %v2013, %v2001
      %vm2017 = vcmask 195584
      %v2018 = vsel %vm2017, %v2015, %v2007
      %v2019 = vsel %vm2017, %v2016, %v2009
      %v2020 = vld [vmem:[%s814] sm:$0xff]
      %v2021 = vld [vmem:[%s814 + $0x8] sm:$0xff]
      %v2022 = vld [vmem:[%s814 + $0x10] sm:$0xff]
      %v2023 = vld [vmem:[%s814 + $0x18] sm:$0xff]
      %v2024 = vld [vmem:[%s817] sm:$0x1]
      %v2026 = vlaneseq
      %v2027 = vshrl.u32 %v2026, 7
      %v2028 = vsub.s32 0, %v2027
      %v2029 = vrot.slane %v2024, %v2028
      %v2032 = vsel %vm1027, %v2018, 0
      %v2035 = vsel %vm1027, %v2019, 0
      %2037 = vmatprep.subr.mxu0 0.0
      %2038 = vmatpush1.msra.mxu0 %v2020
      %2039 = vmatprep.subr.mxu0 0.0
      %2040 = vmatpush1.msra.mxu0 %v2021
      %2041 = vmatprep.subr.mxu0 0.0
      %2042 = vmatpush1.msra.mxu0 %v2022
      %2043 = vmatprep.subr.mxu0 0.0
      %2044 = vmatpush1.msra.mxu0 %v2023
      %2045 = vmatprep.subr.mxu0 0.0
      %2046 = vmatpush1.msra.mxu0 0.0
      %2047 = vmatprep.subr.mxu0 0.0
      %2048 = vmatpush1.msra.mxu0 0.0
      %2049 = vmatprep.subr.mxu0 0.0
      %2050 = vmatpush1.msra.mxu0 0.0
      %2051 = vmatprep.subr.mxu0 0.0
      %2052 = vmatpush1.msra.mxu0 0.0
      %2053 = vmatprep.subr.mxu0 0.0
      %2054 = vmatpush1.msra.mxu0 0.0
      %2055 = vmatprep.subr.mxu0 0.0
      %2056 = vmatpush1.msra.mxu0 0.0
      %2057 = vmatprep.subr.mxu0 0.0
      %2058 = vmatpush1.msra.mxu0 0.0
      %2059 = vmatprep.subr.mxu0 0.0
      %2060 = vmatpush1.msra.mxu0 0.0
      %2061 = vmatprep.subr.mxu0 0.0
      %2062 = vmatpush1.msra.mxu0 0.0
      %2063 = vmatprep.subr.mxu0 0.0
      %2064 = vmatpush1.msra.mxu0 0.0
      %2065 = vmatprep.subr.mxu0 0.0
      %2066 = vmatpush1.msra.mxu0 0.0
      %2067 = vmatprep.subr.mxu0 0.0
      %2068 = vmatpush1.msra.mxu0 0.0
      %2069 = vmatprep.subr.mxu0 0.0
      %2070 = vmatpush1.msra.mxu0 0.0
      %2071 = vmatprep.subr.mxu0 0.0
      %2072 = vmatpush1.msra.mxu0 0.0
      %2073 = vmatprep.subr.mxu0 0.0
      %2074 = vmatpush1.msra.mxu0 0.0
      %2075 = vmatprep.subr.mxu0 0.0
      %2076 = vmatpush1.msra.mxu0 0.0
      %2077 = vmatprep.subr.mxu0 0.0
      %2078 = vmatpush1.msra.mxu0 0.0
      %2079 = vmatprep.subr.mxu0 0.0
      %2080 = vmatpush1.msra.mxu0 0.0
      %2081 = vmatprep.subr.mxu0 0.0
      %2082 = vmatpush1.msra.mxu0 0.0
      %2083 = vmatprep.subr.mxu0 0.0
      %2084 = vmatpush1.msra.mxu0 0.0
      %2085 = vmatprep.subr.mxu0 0.0
      %2086 = vmatpush1.msra.mxu0 0.0
      %2087 = vmatprep.subr.mxu0 0.0
      %2088 = vmatpush1.msra.mxu0 0.0
      %2089 = vmatprep.subr.mxu0 0.0
      %2090 = vmatpush1.msra.mxu0 0.0
      %2091 = vmatprep.subr.mxu0 0.0
      %2092 = vmatpush1.msra.mxu0 0.0
      %2093 = vmatprep.subr.mxu0 0.0
      %2094 = vmatpush1.msra.mxu0 0.0
      %2095 = vmatprep.subr.mxu0 0.0
      %2096 = vmatpush1.msra.mxu0 0.0
      %2097 = vmatprep.subr.mxu0 0.0
      %2098 = vmatpush1.msra.mxu0 0.0
      %2099 = vmatprep.subr.mxu0 0.0
      %2100 = vmatpush1.msra.mxu0 0.0
      %2101 = vmatprep.mubr.f32.mxu0 0.0
      %2102 = vmatmul.mubr.f32.gmra.mrb[0].mxu0 %v2032
      %v2103 = vpop.f32.mrb[0].mxu0
      %v2104 = vadd.f32 %v2029, %v2103
      %v2105 = vpop.f32.mrb[0].mxu0
      %2106 = vmatprep.mubr.f32.mxu0 0.0
      %2107 = vmatmul.mubr.f32.gmra.mrb[0].mxu0 %v2035
      %v2108 = vpop.f32.mrb[0].mxu0
      %v2109 = vadd.f32 %v2029, %v2108
      %v2110 = vpop.f32.mrb[0].mxu0
      %2111 = vdwg.mxu0
      %v2112 = vadd.f32 %v1021, %v2104
      %v2113 = vadd.f32 %v1022, %v2109
      %v2114 = vld [vmem:[%s820] sm:$0x1]
      %v2115 = vld [vmem:[%s823] sm:$0x1]
      %v2116 = vsel %vm1027, %v2112, 0.0
      %2117 = vadd.xlane.f32.xlu0 %v2116
      %v2118 = vpop.xlane.xlu0 %2117
      %v2119 = vsel %vm1031, %v2113, 0.0
      %2120 = vadd.xlane.f32.xlu0 %v2119
      %v2121 = vpop.xlane.xlu0 %2120
      %v2122 = vmul.f32 %v2118, %v1035
      %v2123 = vmul.f32 %v2121, %v1035
      %v2124 = vsub.f32 %v2112, %v2122
      %v2125 = vsub.f32 %v2113, %v2123
      %v2126 = vmul.f32 %v2124, %v2124
      %v2127 = vmul.f32 %v2125, %v2125
      %v2128 = vsel %vm1027, %v2126, 0.0
      %2129 = vadd.xlane.f32.xlu0 %v2128
      %v2130 = vpop.xlane.xlu0 %2129
      %v2131 = vsel %vm1031, %v2127, 0.0
      %2132 = vadd.xlane.f32.xlu0 %v2131
      %v2133 = vpop.xlane.xlu0 %2132
      %v2134 = vmul.f32 %v2130, %v1035
      %v2135 = vmul.f32 %v2133, %v1035
      %v2136 = vadd.f32 %v2134, 1e-05
      %v2137 = vadd.f32 %v2135, 1e-05
      %v2138 = vrsqrt.pop %v2136
      %v2139 = vrsqrt.pop %v2137
      %v2140 = vmul.f32 %v2124, %v2138
      %v2141 = vmul.f32 %v2125, %v2139
      %v2143 = vlaneseq
      %v2144 = vshrl.u32 %v2143, 7
      %v2145 = vsub.s32 0, %v2144
      %v2146 = vrot.slane %v2114, %v2145
      %v2148 = vmul.f32 %v2140, %v2146
      %v2149 = vmul.f32 %v2141, %v2146
      %v2151 = vlaneseq
      %v2152 = vshrl.u32 %v2151, 7
      %v2153 = vsub.s32 0, %v2152
      %v2154 = vrot.slane %v2115, %v2153
      %v2156 = vadd.f32 %v2148, %v2154
      %v2157 = vadd.f32 %v2149, %v2154
      %v2158 = vld [vmem:[%s828] sm:$0xff]
      %v2159 = vld [vmem:[%s828 + $0x8] sm:$0xff]
      %v2160 = vld [vmem:[%s828 + $0x10] sm:$0xff]
      %v2161 = vld [vmem:[%s828 + $0x18] sm:$0xff]
      %v2162 = vld [vmem:[%s831] sm:$0x1]
      %v2164 = vlaneseq
      %v2165 = vshrl.u32 %v2164, 7
      %v2166 = vsub.s32 0, %v2165
      %v2167 = vrot.slane %v2162, %v2166
      %v2170 = vsel %vm1027, %v2156, 0
      %v2173 = vsel %vm1027, %v2157, 0
      %2175 = vmatprep.subr.mxu0 0.0
      %2176 = vmatpush1.msra.mxu0 %v2158
      %2177 = vmatprep.subr.mxu0 0.0
      %2178 = vmatpush1.msra.mxu0 %v2159
      %2179 = vmatprep.subr.mxu0 0.0
      %2180 = vmatpush1.msra.mxu0 %v2160
      %2181 = vmatprep.subr.mxu0 0.0
      %2182 = vmatpush1.msra.mxu0 %v2161
      %2183 = vmatprep.subr.mxu0 0.0
      %2184 = vmatpush1.msra.mxu0 0.0
      %2185 = vmatprep.subr.mxu0 0.0
      %2186 = vmatpush1.msra.mxu0 0.0
      %2187 = vmatprep.subr.mxu0 0.0
      %2188 = vmatpush1.msra.mxu0 0.0
      %2189 = vmatprep.subr.mxu0 0.0
      %2190 = vmatpush1.msra.mxu0 0.0
      %2191 = vmatprep.subr.mxu0 0.0
      %2192 = vmatpush1.msra.mxu0 0.0
      %2193 = vmatprep.subr.mxu0 0.0
      %2194 = vmatpush1.msra.mxu0 0.0
      %2195 = vmatprep.subr.mxu0 0.0
      %2196 = vmatpush1.msra.mxu0 0.0
      %2197 = vmatprep.subr.mxu0 0.0
      %2198 = vmatpush1.msra.mxu0 0.0
      %2199 = vmatprep.subr.mxu0 0.0
      %2200 = vmatpush1.msra.mxu0 0.0
      %2201 = vmatprep.subr.mxu0 0.0
      %2202 = vmatpush1.msra.mxu0 0.0
      %2203 = vmatprep.subr.mxu0 0.0
      %2204 = vmatpush1.msra.mxu0 0.0
      %2205 = vmatprep.subr.mxu0 0.0
      %2206 = vmatpush1.msra.mxu0 0.0
      %2207 = vmatprep.subr.mxu0 0.0
      %2208 = vmatpush1.msra.mxu0 0.0
      %2209 = vmatprep.subr.mxu0 0.0
      %2210 = vmatpush1.msra.mxu0 0.0
      %2211 = vmatprep.subr.mxu0 0.0
      %2212 = vmatpush1.msra.mxu0 0.0
      %2213 = vmatprep.subr.mxu0 0.0
      %2214 = vmatpush1.msra.mxu0 0.0
      %2215 = vmatprep.subr.mxu0 0.0
      %2216 = vmatpush1.msra.mxu0 0.0
      %2217 = vmatprep.subr.mxu0 0.0
      %2218 = vmatpush1.msra.mxu0 0.0
      %2219 = vmatprep.subr.mxu0 0.0
      %2220 = vmatpush1.msra.mxu0 0.0
      %2221 = vmatprep.subr.mxu0 0.0
      %2222 = vmatpush1.msra.mxu0 0.0
      %2223 = vmatprep.subr.mxu0 0.0
      %2224 = vmatpush1.msra.mxu0 0.0
      %2225 = vmatprep.subr.mxu0 0.0
      %2226 = vmatpush1.msra.mxu0 0.0
      %2227 = vmatprep.subr.mxu0 0.0
      %2228 = vmatpush1.msra.mxu0 0.0
      %2229 = vmatprep.subr.mxu0 0.0
      %2230 = vmatpush1.msra.mxu0 0.0
      %2231 = vmatprep.subr.mxu0 0.0
      %2232 = vmatpush1.msra.mxu0 0.0
      %2233 = vmatprep.subr.mxu0 0.0
      %2234 = vmatpush1.msra.mxu0 0.0
      %2235 = vmatprep.subr.mxu0 0.0
      %2236 = vmatpush1.msra.mxu0 0.0
      %2237 = vmatprep.subr.mxu0 0.0
      %2238 = vmatpush1.msra.mxu0 0.0
      %2239 = vmatprep.mubr.f32.mxu0 0.0
      %2240 = vmatmul.mubr.f32.gmra.mrb[0].mxu0 %v2170
      %v2241 = vpop.f32.mrb[0].mxu0
      %v2242 = vadd.f32 %v2167, %v2241
      %v2243 = vpop.f32.mrb[0].mxu0
      %2244 = vmatprep.mubr.f32.mxu0 0.0
      %2245 = vmatmul.mubr.f32.gmra.mrb[0].mxu0 %v2173
      %v2246 = vpop.f32.mrb[0].mxu0
      %v2247 = vadd.f32 %v2167, %v2246
      %v2248 = vpop.f32.mrb[0].mxu0
      %2249 = vdwg.mxu0
      %v2250 = vmul.f32 %v2242, 0.5
      %v2251 = vmul.f32 %v2247, 0.5
      %v2252 = vmul.f32 %v2242, 0.044715
      %v2253 = vmul.f32 %v2247, 0.044715
      %v2254 = vmul.f32 %v2252, %v2242
      %v2255 = vmul.f32 %v2253, %v2247
      %v2256 = vmul.f32 %v2254, %v2242
      %v2257 = vmul.f32 %v2255, %v2247
      %v2258 = vadd.f32 %v2242, %v2256
      %v2259 = vadd.f32 %v2247, %v2257
      %v2260 = vmul.f32 %v2258, 0.7978846
      %v2261 = vmul.f32 %v2259, 0.7978846
      %v2262 = vtanh.pop %v2260
      %v2263 = vtanh.pop %v2261
      %v2264 = vadd.f32 %v2262, 1.0
      %v2265 = vadd.f32 %v2263, 1.0
      %v2266 = vmul.f32 %v2250, %v2264
      %v2267 = vmul.f32 %v2251, %v2265
      %v2268 = vld [vmem:[%s836] sm:$0xff]
      %v2269 = vld [vmem:[%s836 + $0x8] sm:$0xff]
      %v2270 = vld [vmem:[%s836 + $0x10] sm:$0xff]
      %v2271 = vld [vmem:[%s836 + $0x18] sm:$0xff]
      %v2272 = vld [vmem:[%s836 + $0x20] sm:$0xff]
      %v2273 = vld [vmem:[%s836 + $0x28] sm:$0xff]
      %v2274 = vld [vmem:[%s836 + $0x30] sm:$0xff]
      %v2275 = vld [vmem:[%s836 + $0x38] sm:$0xff]
      %v2276 = vld [vmem:[%s836 + $0x40] sm:$0xff]
      %v2277 = vld [vmem:[%s836 + $0x48] sm:$0xff]
      %v2278 = vld [vmem:[%s836 + $0x50] sm:$0xff]
      %v2279 = vld [vmem:[%s836 + $0x58] sm:$0xff]
      %v2280 = vld [vmem:[%s836 + $0x60] sm:$0xff]
      %v2281 = vld [vmem:[%s836 + $0x68] sm:$0xff]
      %v2282 = vld [vmem:[%s836 + $0x70] sm:$0xff]
      %v2283 = vld [vmem:[%s836 + $0x78] sm:$0xff]
      %2284 = vmatprep.subr.mxu0 0.0
      %2285 = vmatpush1.msra.mxu0 %v2268
      %2286 = vmatprep.subr.mxu0 0.0
      %2287 = vmatpush1.msra.mxu0 %v2269
      %2288 = vmatprep.subr.mxu0 0.0
      %2289 = vmatpush1.msra.mxu0 %v2270
      %2290 = vmatprep.subr.mxu0 0.0
      %2291 = vmatpush1.msra.mxu0 %v2271
      %2292 = vmatprep.subr.mxu0 0.0
      %2293 = vmatpush1.msra.mxu0 %v2272
      %2294 = vmatprep.subr.mxu0 0.0
      %2295 = vmatpush1.msra.mxu0 %v2273
      %2296 = vmatprep.subr.mxu0 0.0
      %2297 = vmatpush1.msra.mxu0 %v2274
      %2298 = vmatprep.subr.mxu0 0.0
      %2299 = vmatpush1.msra.mxu0 %v2275
      %2300 = vmatprep.subr.mxu0 0.0
      %2301 = vmatpush1.msra.mxu0 %v2276
      %2302 = vmatprep.subr.mxu0 0.0
      %2303 = vmatpush1.msra.mxu0 %v2277
      %2304 = vmatprep.subr.mxu0 0.0
      %2305 = vmatpush1.msra.mxu0 %v2278
      %2306 = vmatprep.subr.mxu0 0.0
      %2307 = vmatpush1.msra.mxu0 %v2279
      %2308 = vmatprep.subr.mxu0 0.0
      %2309 = vmatpush1.msra.mxu0 %v2280
      %2310 = vmatprep.subr.mxu0 0.0
      %2311 = vmatpush1.msra.mxu0 %v2281
      %2312 = vmatprep.subr.mxu0 0.0
      %2313 = vmatpush1.msra.mxu0 %v2282
      %2314 = vmatprep.subr.mxu0 0.0
      %2315 = vmatpush1.msra.mxu0 %v2283
      %2316 = vmatprep.subr.mxu0 0.0
      %2317 = vmatpush1.msra.mxu0 0.0
      %2318 = vmatprep.subr.mxu0 0.0
      %2319 = vmatpush1.msra.mxu0 0.0
      %2320 = vmatprep.subr.mxu0 0.0
      %2321 = vmatpush1.msra.mxu0 0.0
      %2322 = vmatprep.subr.mxu0 0.0
      %2323 = vmatpush1.msra.mxu0 0.0
      %2324 = vmatprep.subr.mxu0 0.0
      %2325 = vmatpush1.msra.mxu0 0.0
      %2326 = vmatprep.subr.mxu0 0.0
      %2327 = vmatpush1.msra.mxu0 0.0
      %2328 = vmatprep.subr.mxu0 0.0
      %2329 = vmatpush1.msra.mxu0 0.0
      %2330 = vmatprep.subr.mxu0 0.0
      %2331 = vmatpush1.msra.mxu0 0.0
      %2332 = vmatprep.subr.mxu0 0.0
      %2333 = vmatpush1.msra.mxu0 0.0
      %2334 = vmatprep.subr.mxu0 0.0
      %2335 = vmatpush1.msra.mxu0 0.0
      %2336 = vmatprep.subr.mxu0 0.0
      %2337 = vmatpush1.msra.mxu0 0.0
      %2338 = vmatprep.subr.mxu0 0.0
      %2339 = vmatpush1.msra.mxu0 0.0
      %2340 = vmatprep.subr.mxu0 0.0
      %2341 = vmatpush1.msra.mxu0 0.0
      %2342 = vmatprep.subr.mxu0 0.0
      %2343 = vmatpush1.msra.mxu0 0.0
      %2344 = vmatprep.subr.mxu0 0.0
      %2345 = vmatpush1.msra.mxu0 0.0
      %2346 = vmatprep.subr.mxu0 0.0
      %2347 = vmatpush1.msra.mxu0 0.0
      %2348 = vmatprep.mubr.f32.mxu0 0.0
      %2349 = vmatmul.mubr.f32.gmra.mrb[0].mxu0 %v2266
      %v2350 = vpop.f32.mrb[0].mxu0
      %v2351 = vadd.f32 0.0, %v2350
      %v2352 = vpop.f32.mrb[0].mxu0
      %2353 = vmatprep.mubr.f32.mxu0 0.0
      %2354 = vmatmul.mubr.f32.gmra.mrb[0].mxu0 %v2267
      %v2355 = vpop.f32.mrb[0].mxu0
      %v2356 = vadd.f32 0.0, %v2355
      %v2357 = vpop.f32.mrb[0].mxu0
      %2358 = vdwg.mxu0
      %v2359 = vadd.f32 %v2112, %v2351
      %v2360 = vadd.f32 %v2113, %v2356
      %v2361 = vld [vmem:[%s839] sm:$0x1]
      %v2363 = vlaneseq
      %v2364 = vshrl.u32 %v2363, 7
      %v2365 = vsub.s32 0, %v2364
      %v2366 = vrot.slane %v2361, %v2365
      %v2368 = vadd.f32 %v2359, %v2366
      %v2369 = vadd.f32 %v2360, %v2366
      %2370 = vst.msk [vmem:[#allocation2] sm:$0xff] %vm1027, %v2368
      %2371 = vst.msk [vmem:[#allocation2 + $0x8] sm:$0x1] %vm1031, %v2369
      %p2372 = scmp.eq.s32.totalorder %s36, 1
      // Predicated region
      $region105: #{singlestep_pose_forward.1} parent=99 // pred_check
        %p2373 = pneg %p2372
      $region106: #{singlestep_pose_forward.1} parent=99 // pred_check_branch
        %2375 = sbr.rel (%p2373) target = $region108
      $region107: #{singlestep_pose_forward.1} parent=99 // pred_region
        %v2376 = vld [vmem:[%s18] sm:$0xff]
        %v2377 = vld [vmem:[%s18 + $0x8] sm:$0xff]
        %v2378 = vld [vmem:[%s18 + $0x10] sm:$0xff]
        %v2379 = vld [vmem:[%s18 + $0x18] sm:$0xff]
        %v2380 = vld [vmem:[%s19] sm:$0x1]
        %v2382 = vlaneseq
        %v2383 = vshrl.u32 %v2382, 7
        %v2384 = vsub.s32 0, %v2383
        %v2385 = vrot.slane %v2380, %v2384
        %v2388 = vsel %vm1027, %v2368, 0
        %v2391 = vsel %vm1027, %v2369, 0
        %2393 = vmatprep.subr.mxu0 0.0
        %2394 = vmatpush1.msra.mxu0 %v2376
        %2395 = vmatprep.subr.mxu0 0.0
        %2396 = vmatpush1.msra.mxu0 %v2377
        %2397 = vmatprep.subr.mxu0 0.0
        %2398 = vmatpush1.msra.mxu0 %v2378
        %2399 = vmatprep.subr.mxu0 0.0
        %2400 = vmatpush1.msra.mxu0 %v2379
        %2401 = vmatprep.subr.mxu0 0.0
        %2402 = vmatpush1.msra.mxu0 0.0
        %2403 = vmatprep.subr.mxu0 0.0
        %2404 = vmatpush1.msra.mxu0 0.0
        %2405 = vmatprep.subr.mxu0 0.0
        %2406 = vmatpush1.msra.mxu0 0.0
        %2407 = vmatprep.subr.mxu0 0.0
        %2408 = vmatpush1.msra.mxu0 0.0
        %2409 = vmatprep.subr.mxu0 0.0
        %2410 = vmatpush1.msra.mxu0 0.0
        %2411 = vmatprep.subr.mxu0 0.0
        %2412 = vmatpush1.msra.mxu0 0.0
        %2413 = vmatprep.subr.mxu0 0.0
        %2414 = vmatpush1.msra.mxu0 0.0
        %2415 = vmatprep.subr.mxu0 0.0
        %2416 = vmatpush1.msra.mxu0 0.0
        %2417 = vmatprep.subr.mxu0 0.0
        %2418 = vmatpush1.msra.mxu0 0.0
        %2419 = vmatprep.subr.mxu0 0.0
        %2420 = vmatpush1.msra.mxu0 0.0
        %2421 = vmatprep.subr.mxu0 0.0
        %2422 = vmatpush1.msra.mxu0 0.0
        %2423 = vmatprep.subr.mxu0 0.0
        %2424 = vmatpush1.msra.mxu0 0.0
        %2425 = vmatprep.subr.mxu0 0.0
        %2426 = vmatpush1.msra.mxu0 0.0
        %2427 = vmatprep.subr.mxu0 0.0
        %2428 = vmatpush1.msra.mxu0 0.0
        %2429 = vmatprep.subr.mxu0 0.0
        %2430 = vmatpush1.msra.mxu0 0.0
        %2431 = vmatprep.subr.mxu0 0.0
        %2432 = vmatpush1.msra.mxu0 0.0
        %2433 = vmatprep.subr.mxu0 0.0
        %2434 = vmatpush1.msra.mxu0 0.0
        %2435 = vmatprep.subr.mxu0 0.0
        %2436 = vmatpush1.msra.mxu0 0.0
        %2437 = vmatprep.subr.mxu0 0.0
        %2438 = vmatpush1.msra.mxu0 0.0
        %2439 = vmatprep.subr.mxu0 0.0
        %2440 = vmatpush1.msra.mxu0 0.0
        %2441 = vmatprep.subr.mxu0 0.0
        %2442 = vmatpush1.msra.mxu0 0.0
        %2443 = vmatprep.subr.mxu0 0.0
        %2444 = vmatpush1.msra.mxu0 0.0
        %2445 = vmatprep.subr.mxu0 0.0
        %2446 = vmatpush1.msra.mxu0 0.0
        %2447 = vmatprep.subr.mxu0 0.0
        %2448 = vmatpush1.msra.mxu0 0.0
        %2449 = vmatprep.subr.mxu0 0.0
        %2450 = vmatpush1.msra.mxu0 0.0
        %2451 = vmatprep.subr.mxu0 0.0
        %2452 = vmatpush1.msra.mxu0 0.0
        %2453 = vmatprep.subr.mxu0 0.0
        %2454 = vmatpush1.msra.mxu0 0.0
        %2455 = vmatprep.subr.mxu0 0.0
        %2456 = vmatpush1.msra.mxu0 0.0
        %2457 = vmatprep.mubr.f32.mxu0 0.0
        %2458 = vmatmul.mubr.f32.gmra.mrb[0].mxu0 %v2388
        %v2459 = vpop.f32.mrb[0].mxu0
        %v2460 = vadd.f32 %v2385, %v2459
        %v2461 = vpop.f32.mrb[0].mxu0
        %2462 = vmatprep.mubr.f32.mxu0 0.0
        %2463 = vmatmul.mubr.f32.gmra.mrb[0].mxu0 %v2391
        %v2464 = vpop.f32.mrb[0].mxu0
        %v2465 = vadd.f32 %v2385, %v2464
        %v2466 = vpop.f32.mrb[0].mxu0
        %2467 = vdwg.mxu0
        %2468 = vst.msk [vmem:[%s844] sm:$0xff] %vm1570, %v2460
        %vm2469 = vcmask 65536
        %2470 = vst.msk [vmem:[%s844 + $0x8] sm:$0x1] %vm2469, %v2465
      $region108: #{singlestep_pose_forward.1} parent=99 // pred_fallthru
        _
      %p2471 = scmp.lt.s32.totalorder %s35, 1
      %s2472 = scalar_select %p2471, %s35, 1
      %s2473 = smul.addr %s2472, 2
      %s2474 = smul.addr %s2473, 8
      %s2475 = scalar_lea.vmem %s20, %s2474
      // Predicated region
      $region109: #{singlestep_pose_forward.1} parent=99 // pred_check
        %p2476 = pneg %p551
      $region110: #{singlestep_pose_forward.1} parent=99 // pred_check_branch
        %2478 = sbr.rel (%p2476) target = $region112
      $region111: #{singlestep_pose_forward.1} parent=99 // pred_region
        _
      $region112: #{singlestep_pose_forward.1} parent=99 // pred_fallthru
        _
    $region100: #{singlestep_pose_forward.1} parent=5 // pred_fallthru
      _
    %p2479 = scmp.le.s32.totalorder 2, %s26
    // Predicated region
    $region113: #{singlestep_pose_forward.1} parent=5 // pred_check
      %p2480 = pneg %p2479
    $region114: #{singlestep_pose_forward.1} parent=5 // pred_check_branch
      %2482 = sbr.rel (%p2480) target = $region116
    $region115: #{singlestep_pose_forward.1} parent=5 // pred_region
      %s2483 = ssub.s32 %s26, 2
      // Predicated region
      $region117: #{singlestep_pose_forward.1} parent=115 // pred_check
        %p2484 = pneg %p557
      $region118: #{singlestep_pose_forward.1} parent=115 // pred_check_branch
        %2486 = sbr.rel (%p2484) target = $region120
      $region119: #{singlestep_pose_forward.1} parent=115 // pred_region
        %p2487 = scmp.lt.s32.totalorder %s37, 1
        %s2488 = scalar_select %p2487, %s37, 1
        %s2489 = smul.addr %s2488, 2
        %s2490 = smul.addr %s2489, 8
        %s2491 = scalar_lea.vmem %s20, %s2490
      $region120: #{singlestep_pose_forward.1} parent=115 // pred_fallthru
        _
    $region116: #{singlestep_pose_forward.1} parent=5 // pred_fallthru
      _
  $region6: #{singlestep_pose_forward.1} parent=0 // loop_footer
    %s30 = sadd.s32 1, %s26
  $region7: #{singlestep_pose_forward.1} parent=0 // loop_footer_branch
    %25 = sbr.rel target = $region3
  $region8: #{singlestep_pose_forward.1} parent=0 // loop_exit
    _

</llo_original>
